<compile_context>
chip_gen: v7x
topology: tpu7x:2x2x1
jax: 0.10.0
libtpu: 0.0.40
codegen_flags: <defaults>
</compile_context>

<pallas_src>
import functools

import jax
import jax.numpy as jnp
from jax.experimental import pallas as pl
from jax.experimental.pallas import tpu as pltpu

PATCH = 4            # Swin patch-embed stride (gives the 1/4-resolution output)
EMBED_DIM = 128      # stand-in for the Swin embedding dim (lane-dense)
MLP_DIM = 256
OUT_CHANNELS = 256   # Mask2Former decoder_last_hidden_state channel count
M_QUANTUM = 256      # row-padding quantum: bounds padding waste to < 256 rows
MAX_TILE_M = 2048    # per-step row tile cap: ~10 MiB working set, fits v7x


def _round_up(x, m):
    return (x + m - 1) // m * m


def _native_bf16_vpu():
    """True on chips with native bf16 VPU/EUP (v6e, v7x); False on <= v5."""
    try:
        kind = jax.devices()[0].device_kind.lower()
    except Exception:
        return False
    return not any(t in kind for t in ("v2", "v3", "v4", "v5"))


def _pick_tile_m(m_pad):
    """Largest power-of-two multiple of M_QUANTUM dividing m_pad, <= MAX_TILE_M,
    while keeping at least 2 grid steps when possible (megacore sharding)."""
    tile_m = M_QUANTUM
    while (tile_m * 2 <= MAX_TILE_M
           and m_pad % (tile_m * 2) == 0
           and m_pad // (tile_m * 2) >= 2):
        tile_m *= 2
    return tile_m


def _extractor_kernel(patches_ref, w_emb_ref, b_emb_ref, gamma_ref, beta_ref,
                      w1_ref, b1_ref, w2_ref, b2_ref, w_out_ref, b_out_ref,
                      out_ref, *, ew_dtype):
    # Patch embedding: (tile_m, 48) @ (48, 128); bf16 operands, f32 accumulate.
    # (== conv 4x4 stride 4 on the NCHW input.)
    x = jnp.dot(patches_ref[...], w_emb_ref[...],
                preferred_element_type=jnp.float32) + b_emb_ref[...]

    # Single-pass LayerNorm statistics (var = E[x^2] - mu^2), kept in f32.
    mu = jnp.mean(x, axis=-1, keepdims=True)
    var = jnp.mean(x * x, axis=-1, keepdims=True) - mu * mu
    xn = ((x - mu) * jax.lax.rsqrt(var + 1e-5)).astype(ew_dtype)

    # LN affine + residual GELU MLP block in ew_dtype
    # (bf16 on v6e/v7x: native VPU/EUP; f32 on <= v5).
    xa = xn * gamma_ref[...].astype(ew_dtype) + beta_ref[...].astype(ew_dtype)

    h = jnp.dot(xa.astype(jnp.bfloat16), w1_ref[...],
                preferred_element_type=jnp.float32)
    h = jax.nn.gelu(h.astype(ew_dtype) + b1_ref[...].astype(ew_dtype))

    r = jnp.dot(h.astype(jnp.bfloat16), w2_ref[...],
                preferred_element_type=jnp.float32)
    xa = xa + (r.astype(ew_dtype) + b2_ref[...].astype(ew_dtype))

    # 1x1 conv projection to the decoder feature channels; bf16 writeback.
    y = jnp.dot(xa.astype(jnp.bfloat16), w_out_ref[...],
                preferred_element_type=jnp.float32)
    out_ref[...] = (y.astype(ew_dtype)
                    + b_out_ref[...].astype(ew_dtype)).astype(out_ref.dtype)


def _init_params(key, in_channels):
    k = jax.random.split(key, 4)
    kdim = in_channels * PATCH * PATCH
    return {
        "w_emb": jax.random.normal(k[0], (kdim, EMBED_DIM), jnp.float32) * 0.05,
        "b_emb": jnp.zeros((1, EMBED_DIM), jnp.float32),
        "gamma": jnp.ones((1, EMBED_DIM), jnp.float32),
        "beta": jnp.zeros((1, EMBED_DIM), jnp.float32),
        "w1": jax.random.normal(k[1], (EMBED_DIM, MLP_DIM), jnp.float32) * 0.05,
        "b1": jnp.zeros((1, MLP_DIM), jnp.float32),
        "w2": jax.random.normal(k[2], (MLP_DIM, EMBED_DIM), jnp.float32) * 0.05,
        "b2": jnp.zeros((1, EMBED_DIM), jnp.float32),
        "w_out": jax.random.normal(k[3], (EMBED_DIM, OUT_CHANNELS),
                                   jnp.float32) * 0.05,
        "b_out": jnp.zeros((1, OUT_CHANNELS), jnp.float32),
    }


@functools.partial(jax.jit, static_argnames=("channels_last",))
def full_mask2former_extractor(img, params, channels_last=False):
    """img: NCHW float32 (B, C, H, W).

    Returns (B, OUT_CHANNELS, H/4, W/4) float32 (PyTorch contract), or the
    lane-dense (B, H/4, W/4, OUT_CHANNELS) bf16 slab when channels_last=True
    (preferred for downstream TPU consumers: skips the NCHW transpose).
    """
    B, C, H, W = img.shape
    nh, nw = H // PATCH, W // PATCH
    M = B * nh * nw
    kdim = C * PATCH * PATCH

    # NCHW -> patch rows (M, C*16); conv-4x4-stride-4 expressed as a matmul.
    # Cast to bf16 *before* the 6-D transpose so the layout shuffle writes
    # bf16 (half the wrapper-side HBM traffic).
    patches = img.astype(jnp.bfloat16).reshape(B, C, nh, PATCH, nw, PATCH)
    patches = patches.transpose(0, 2, 4, 1, 3, 5).reshape(M, kdim)

    # Pad rows to a small quantum (bounded waste); no K padding in HBM.
    m_pad = _round_up(M, M_QUANTUM)
    if m_pad != M:
        patches = jnp.pad(patches, ((0, m_pad - M), (0, 0)))
    tile_m = _pick_tile_m(m_pad)
    grid = (m_pad // tile_m,)

    # Elementwise precision: bf16 only where the VPU/EUP support it natively.
    ew_dtype = jnp.bfloat16 if _native_bf16_vpu() else jnp.float32

    def row_map(i):
        return (i, 0)

    def const_map(i):
        return (0, 0)

    weight_specs = [
        pl.BlockSpec((kdim, EMBED_DIM), const_map),         # w_emb (full dims)
        pl.BlockSpec((1, EMBED_DIM), const_map),            # b_emb
        pl.BlockSpec((1, EMBED_DIM), const_map),            # gamma
        pl.BlockSpec((1, EMBED_DIM), const_map),            # beta
        pl.BlockSpec((EMBED_DIM, MLP_DIM), const_map),      # w1
        pl.BlockSpec((1, MLP_DIM), const_map),              # b1
        pl.BlockSpec((MLP_DIM, EMBED_DIM), const_map),      # w2
        pl.BlockSpec((1, EMBED_DIM), const_map),            # b2
        pl.BlockSpec((EMBED_DIM, OUT_CHANNELS), const_map),  # w_out
        pl.BlockSpec((1, OUT_CHANNELS), const_map),         # b_out
    ]

    weight_bytes = 2 * (kdim * EMBED_DIM + 2 * EMBED_DIM * MLP_DIM
                        + EMBED_DIM * OUT_CHANNELS)
    flops = 2 * m_pad * (kdim * EMBED_DIM + EMBED_DIM * MLP_DIM
                         + MLP_DIM * EMBED_DIM + EMBED_DIM * OUT_CHANNELS)
    bytes_accessed = (m_pad * kdim * 2            # bf16 patches in
                      + m_pad * OUT_CHANNELS * 2  # bf16 output
                      + weight_bytes)             # bf16 weights
    transcendentals = m_pad * (MLP_DIM + 1)       # gelu per MLP elem + rsqrt/row

    out = pl.pallas_call(
        functools.partial(_extractor_kernel, ew_dtype=ew_dtype),
        out_shape=jax.ShapeDtypeStruct((m_pad, OUT_CHANNELS), jnp.bfloat16),
        grid=grid,
        in_specs=[pl.BlockSpec((tile_m, kdim), row_map)] + weight_specs,
        out_specs=pl.BlockSpec((tile_m, OUT_CHANNELS), row_map),
        compiler_params=pltpu.CompilerParams(
            dimension_semantics=("parallel",),
            vmem_limit_bytes=32 * 1024 * 1024),
        cost_estimate=pl.CostEstimate(flops=flops,
                                      transcendentals=transcendentals,
                                      bytes_accessed=bytes_accessed),
    )(patches,
      params["w_emb"].astype(jnp.bfloat16), params["b_emb"],
      params["gamma"], params["beta"],
      params["w1"].astype(jnp.bfloat16), params["b1"],
      params["w2"].astype(jnp.bfloat16), params["b2"],
      params["w_out"].astype(jnp.bfloat16), params["b_out"])

    # (m_pad, 256) bf16 -> (M, 256) -> (B, nh, nw, 256).
    out = out[:M].reshape(B, nh, nw, OUT_CHANNELS)
    if channels_last:
        return out                                   # lane-dense TPU-native slab
    # Materialize the f32 NCHW layout only at the PyTorch boundary.
    return out.transpose(0, 3, 1, 2).astype(jnp.float32)


if __name__ == "__main__":
    key = jax.random.PRNGKey(0)
    k_img, k_param = jax.random.split(key)

    # Small deterministic example input, NCHW like the PyTorch module expects.
    B, C, H, W = 2, 3, 16, 16
    img = jax.random.normal(k_img, (B, C, H, W), jnp.float32)
    params = _init_params(k_param, C)

    out = full_mask2former_extractor(img, params)
    out = jax.block_until_ready(out)

    assert out.shape == (B, OUT_CHANNELS, H // PATCH, W // PATCH), out.shape
    assert out.dtype == jnp.float32
    assert bool(jnp.all(jnp.isfinite(out)))
    print("KERNEL_OK")
</pallas_src>

<mosaic_0001>
module attributes {stable_mosaic.version = 11 : i64} {
  func.func @_extractor_kernel(%arg0: i32, %arg1: memref<256x48xbf16, #tpu.memory_space<vmem>>, %arg2: memref<48x128xbf16, #tpu.memory_space<vmem>>, %arg3: memref<1x128xf32, #tpu.memory_space<vmem>>, %arg4: memref<1x128xf32, #tpu.memory_space<vmem>>, %arg5: memref<1x128xf32, #tpu.memory_space<vmem>>, %arg6: memref<128x256xbf16, #tpu.memory_space<vmem>>, %arg7: memref<1x256xf32, #tpu.memory_space<vmem>>, %arg8: memref<256x128xbf16, #tpu.memory_space<vmem>>, %arg9: memref<1x128xf32, #tpu.memory_space<vmem>>, %arg10: memref<128x256xbf16, #tpu.memory_space<vmem>>, %arg11: memref<1x256xf32, #tpu.memory_space<vmem>>, %arg12: memref<256x256xbf16, #tpu.memory_space<vmem>>) attributes {dimension_semantics = [#tpu.dimension_semantics<parallel>], iteration_bounds = array<i64: 1>, scalar_prefetch = 0 : i64, scratch_operands = 0 : i64, tpu.core_type = #tpu.core_type<tc>, window_params = [{transform_indices = @transform_0, window_bounds = array<i64: 256, 48>}, {pipeline_mode = #tpu.pipeline_mode<synchronous>, transform_indices = @transform_1, window_bounds = array<i64: 48, 128>}, {pipeline_mode = #tpu.pipeline_mode<synchronous>, transform_indices = @transform_2, window_bounds = array<i64: 1, 128>}, {pipeline_mode = #tpu.pipeline_mode<synchronous>, transform_indices = @transform_3, window_bounds = array<i64: 1, 128>}, {pipeline_mode = #tpu.pipeline_mode<synchronous>, transform_indices = @transform_4, window_bounds = array<i64: 1, 128>}, {pipeline_mode = #tpu.pipeline_mode<synchronous>, transform_indices = @transform_5, window_bounds = array<i64: 128, 256>}, {pipeline_mode = #tpu.pipeline_mode<synchronous>, transform_indices = @transform_6, window_bounds = array<i64: 1, 256>}, {pipeline_mode = #tpu.pipeline_mode<synchronous>, transform_indices = @transform_7, window_bounds = array<i64: 256, 128>}, {pipeline_mode = #tpu.pipeline_mode<synchronous>, transform_indices = @transform_8, window_bounds = array<i64: 1, 128>}, {pipeline_mode = #tpu.pipeline_mode<synchronous>, transform_indices = @transform_9, window_bounds = array<i64: 128, 256>}, {pipeline_mode = #tpu.pipeline_mode<synchronous>, transform_indices = @transform_10, window_bounds = array<i64: 1, 256>}, {transform_indices = @transform_11, window_bounds = array<i64: 256, 256>}]} {
    %c0 = arith.constant 0 : index
    %c0_0 = arith.constant 0 : index
    %0 = vector.load %arg1[%c0, %c0_0] : memref<256x48xbf16, #tpu.memory_space<vmem>>, vector<256x48xbf16>
    %c0_1 = arith.constant 0 : index
    %c0_2 = arith.constant 0 : index
    %1 = vector.load %arg2[%c0_1, %c0_2] : memref<48x128xbf16, #tpu.memory_space<vmem>>, vector<48x128xbf16>
    %cst = arith.constant dense<0.000000e+00> : vector<256x128xf32>
    %2 = tpu.matmul %0, %1, %cst {dimension_numbers = #tpu.dot_dimension_numbers<[1], [0], [0], [1], [0, 0, 1, 1], [], []>} : vector<256x48xbf16>, vector<48x128xbf16>, vector<256x128xf32> -> vector<256x128xf32>
    %c0_3 = arith.constant 0 : index
    %c0_4 = arith.constant 0 : index
    %3 = vector.load %arg3[%c0_3, %c0_4] : memref<1x128xf32, #tpu.memory_space<vmem>>, vector<1x128xf32>
    %4 = vector.broadcast %3 : vector<1x128xf32> to vector<256x128xf32>
    %5 = arith.addf %2, %4 : vector<256x128xf32>
    %cst_5 = arith.constant dense<0.000000e+00> : vector<256xf32>
    %6 = vector.multi_reduction <add>, %5, %cst_5 [1] : vector<256x128xf32> to vector<256xf32>
    %7 = vector.shape_cast %6 : vector<256xf32> to vector<256x1xf32>
    %cst_6 = arith.constant 1.280000e+02 : f32
    %8 = vector.broadcast %cst_6 : f32 to vector<256x1xf32>
    %9 = arith.divf %7, %8 : vector<256x1xf32>
    %10 = arith.mulf %5, %5 : vector<256x128xf32>
    %cst_7 = arith.constant dense<0.000000e+00> : vector<256xf32>
    %11 = vector.multi_reduction <add>, %10, %cst_7 [1] : vector<256x128xf32> to vector<256xf32>
    %12 = vector.shape_cast %11 : vector<256xf32> to vector<256x1xf32>
    %cst_8 = arith.constant 1.280000e+02 : f32
    %13 = vector.broadcast %cst_8 : f32 to vector<256x1xf32>
    %14 = arith.divf %12, %13 : vector<256x1xf32>
    %15 = arith.mulf %9, %9 : vector<256x1xf32>
    %16 = arith.subf %14, %15 : vector<256x1xf32>
    %17 = vector.broadcast %9 : vector<256x1xf32> to vector<256x128xf32>
    %18 = arith.subf %5, %17 : vector<256x128xf32>
    %cst_9 = arith.constant 9.99999974E-6 : f32
    %19 = vector.broadcast %cst_9 : f32 to vector<256x1xf32>
    %20 = arith.addf %16, %19 : vector<256x1xf32>
    %21 = math.rsqrt %20 : vector<256x1xf32>
    %22 = vector.broadcast %21 : vector<256x1xf32> to vector<256x128xf32>
    %23 = arith.mulf %18, %22 : vector<256x128xf32>
    %24 = arith.truncf %23 : vector<256x128xf32> to vector<256x128xbf16>
    %c0_10 = arith.constant 0 : index
    %c0_11 = arith.constant 0 : index
    %25 = vector.load %arg4[%c0_10, %c0_11] : memref<1x128xf32, #tpu.memory_space<vmem>>, vector<1x128xf32>
    %26 = arith.truncf %25 : vector<1x128xf32> to vector<1x128xbf16>
    %27 = vector.broadcast %26 : vector<1x128xbf16> to vector<256x128xbf16>
    %28 = arith.mulf %24, %27 : vector<256x128xbf16>
    %c0_12 = arith.constant 0 : index
    %c0_13 = arith.constant 0 : index
    %29 = vector.load %arg5[%c0_12, %c0_13] : memref<1x128xf32, #tpu.memory_space<vmem>>, vector<1x128xf32>
    %30 = arith.truncf %29 : vector<1x128xf32> to vector<1x128xbf16>
    %31 = vector.broadcast %30 : vector<1x128xbf16> to vector<256x128xbf16>
    %32 = arith.addf %28, %31 : vector<256x128xbf16>
    %c0_14 = arith.constant 0 : index
    %c0_15 = arith.constant 0 : index
    %33 = vector.load %arg6[%c0_14, %c0_15] : memref<128x256xbf16, #tpu.memory_space<vmem>>, vector<128x256xbf16>
    %cst_16 = arith.constant dense<0.000000e+00> : vector<256x256xf32>
    %34 = tpu.matmul %32, %33, %cst_16 {dimension_numbers = #tpu.dot_dimension_numbers<[1], [0], [0], [1], [0, 0, 1, 1], [], []>} : vector<256x128xbf16>, vector<128x256xbf16>, vector<256x256xf32> -> vector<256x256xf32>
    %35 = arith.truncf %34 : vector<256x256xf32> to vector<256x256xbf16>
    %c0_17 = arith.constant 0 : index
    %c0_18 = arith.constant 0 : index
    %36 = vector.load %arg7[%c0_17, %c0_18] : memref<1x256xf32, #tpu.memory_space<vmem>>, vector<1x256xf32>
    %37 = arith.truncf %36 : vector<1x256xf32> to vector<1x256xbf16>
    %38 = vector.broadcast %37 : vector<1x256xbf16> to vector<256x256xbf16>
    %39 = arith.addf %35, %38 : vector<256x256xbf16>
    %40 = arith.mulf %39, %39 : vector<256x256xbf16>
    %41 = arith.mulf %39, %40 : vector<256x256xbf16>
    %cst_19 = arith.constant 4.467770e-02 : bf16
    %42 = vector.broadcast %cst_19 : bf16 to vector<256x256xbf16>
    %43 = arith.mulf %42, %41 : vector<256x256xbf16>
    %44 = arith.addf %39, %43 : vector<256x256xbf16>
    %cst_20 = arith.constant 7.968750e-01 : bf16
    %45 = vector.broadcast %cst_20 : bf16 to vector<256x256xbf16>
    %46 = arith.mulf %45, %44 : vector<256x256xbf16>
    %47 = math.tanh %46 : vector<256x256xbf16>
    %cst_21 = arith.constant 1.000000e+00 : bf16
    %48 = vector.broadcast %cst_21 : bf16 to vector<256x256xbf16>
    %49 = arith.addf %48, %47 : vector<256x256xbf16>
    %cst_22 = arith.constant 5.000000e-01 : bf16
    %50 = vector.broadcast %cst_22 : bf16 to vector<256x256xbf16>
    %51 = arith.mulf %50, %49 : vector<256x256xbf16>
    %52 = arith.mulf %39, %51 : vector<256x256xbf16>
    %c0_23 = arith.constant 0 : index
    %c0_24 = arith.constant 0 : index
    %53 = vector.load %arg8[%c0_23, %c0_24] : memref<256x128xbf16, #tpu.memory_space<vmem>>, vector<256x128xbf16>
    %cst_25 = arith.constant dense<0.000000e+00> : vector<256x128xf32>
    %54 = tpu.matmul %52, %53, %cst_25 {dimension_numbers = #tpu.dot_dimension_numbers<[1], [0], [0], [1], [0, 0, 1, 1], [], []>} : vector<256x256xbf16>, vector<256x128xbf16>, vector<256x128xf32> -> vector<256x128xf32>
    %55 = arith.truncf %54 : vector<256x128xf32> to vector<256x128xbf16>
    %c0_26 = arith.constant 0 : index
    %c0_27 = arith.constant 0 : index
    %56 = vector.load %arg9[%c0_26, %c0_27] : memref<1x128xf32, #tpu.memory_space<vmem>>, vector<1x128xf32>
    %57 = arith.truncf %56 : vector<1x128xf32> to vector<1x128xbf16>
    %58 = vector.broadcast %57 : vector<1x128xbf16> to vector<256x128xbf16>
    %59 = arith.addf %55, %58 : vector<256x128xbf16>
    %60 = arith.addf %32, %59 : vector<256x128xbf16>
    %c0_28 = arith.constant 0 : index
    %c0_29 = arith.constant 0 : index
    %61 = vector.load %arg10[%c0_28, %c0_29] : memref<128x256xbf16, #tpu.memory_space<vmem>>, vector<128x256xbf16>
    %cst_30 = arith.constant dense<0.000000e+00> : vector<256x256xf32>
    %62 = tpu.matmul %60, %61, %cst_30 {dimension_numbers = #tpu.dot_dimension_numbers<[1], [0], [0], [1], [0, 0, 1, 1], [], []>} : vector<256x128xbf16>, vector<128x256xbf16>, vector<256x256xf32> -> vector<256x256xf32>
    %63 = arith.truncf %62 : vector<256x256xf32> to vector<256x256xbf16>
    %c0_31 = arith.constant 0 : index
    %c0_32 = arith.constant 0 : index
    %64 = vector.load %arg11[%c0_31, %c0_32] : memref<1x256xf32, #tpu.memory_space<vmem>>, vector<1x256xf32>
    %65 = arith.truncf %64 : vector<1x256xf32> to vector<1x256xbf16>
    %66 = vector.broadcast %65 : vector<1x256xbf16> to vector<256x256xbf16>
    %67 = arith.addf %63, %66 : vector<256x256xbf16>
    %c0_33 = arith.constant 0 : index
    %c0_34 = arith.constant 0 : index
    %68 = vector.load %arg12[%c0_33, %c0_34] : memref<256x256xbf16, #tpu.memory_space<vmem>>, vector<256x256xbf16>
    tpu.vector_store %arg12[%c0_33, %c0_34], %67 {strides = array<i32>} : memref<256x256xbf16, #tpu.memory_space<vmem>>, vector<256x256xbf16>,
    return
  }
  func.func @transform_0(%arg0: i32) -> (i32, i32) {
    %c0_i32 = arith.constant 0 : i32
    %c0_i32_0 = arith.constant 0 : i32
    return %arg0, %c0_i32 : i32, i32
  }
  func.func @transform_1(%arg0: i32) -> (i32, i32) {
    %c0_i32 = arith.constant 0 : i32
    %c0_i32_0 = arith.constant 0 : i32
    %c0_i32_1 = arith.constant 0 : i32
    return %c0_i32, %c0_i32_0 : i32, i32
  }
  func.func @transform_2(%arg0: i32) -> (i32, i32) {
    %c0_i32 = arith.constant 0 : i32
    %c0_i32_0 = arith.constant 0 : i32
    %c0_i32_1 = arith.constant 0 : i32
    return %c0_i32, %c0_i32_0 : i32, i32
  }
  func.func @transform_3(%arg0: i32) -> (i32, i32) {
    %c0_i32 = arith.constant 0 : i32
    %c0_i32_0 = arith.constant 0 : i32
    %c0_i32_1 = arith.constant 0 : i32
    return %c0_i32, %c0_i32_0 : i32, i32
  }
  func.func @transform_4(%arg0: i32) -> (i32, i32) {
    %c0_i32 = arith.constant 0 : i32
    %c0_i32_0 = arith.constant 0 : i32
    %c0_i32_1 = arith.constant 0 : i32
    return %c0_i32, %c0_i32_0 : i32, i32
  }
  func.func @transform_5(%arg0: i32) -> (i32, i32) {
    %c0_i32 = arith.constant 0 : i32
    %c0_i32_0 = arith.constant 0 : i32
    %c0_i32_1 = arith.constant 0 : i32
    return %c0_i32, %c0_i32_0 : i32, i32
  }
  func.func @transform_6(%arg0: i32) -> (i32, i32) {
    %c0_i32 = arith.constant 0 : i32
    %c0_i32_0 = arith.constant 0 : i32
    %c0_i32_1 = arith.constant 0 : i32
    return %c0_i32, %c0_i32_0 : i32, i32
  }
  func.func @transform_7(%arg0: i32) -> (i32, i32) {
    %c0_i32 = arith.constant 0 : i32
    %c0_i32_0 = arith.constant 0 : i32
    %c0_i32_1 = arith.constant 0 : i32
    return %c0_i32, %c0_i32_0 : i32, i32
  }
  func.func @transform_8(%arg0: i32) -> (i32, i32) {
    %c0_i32 = arith.constant 0 : i32
    %c0_i32_0 = arith.constant 0 : i32
    %c0_i32_1 = arith.constant 0 : i32
    return %c0_i32, %c0_i32_0 : i32, i32
  }
  func.func @transform_9(%arg0: i32) -> (i32, i32) {
    %c0_i32 = arith.constant 0 : i32
    %c0_i32_0 = arith.constant 0 : i32
    %c0_i32_1 = arith.constant 0 : i32
    return %c0_i32, %c0_i32_0 : i32, i32
  }
  func.func @transform_10(%arg0: i32) -> (i32, i32) {
    %c0_i32 = arith.constant 0 : i32
    %c0_i32_0 = arith.constant 0 : i32
    %c0_i32_1 = arith.constant 0 : i32
    return %c0_i32, %c0_i32_0 : i32, i32
  }
  func.func @transform_11(%arg0: i32) -> (i32, i32) {
    %c0_i32 = arith.constant 0 : i32
    %c0_i32_0 = arith.constant 0 : i32
    return %arg0, %c0_i32 : i32, i32
  }
}

</mosaic_0001>

<llo_original>
// kernel: full_mask2former_extractor.1
$region0: #{full_mask2former_extractor.1}
  #allocation0 [shape = 'u32[]', space=smem, size = 0x4, offset = 0x4, fixed_abs, tag = 'smem constant byte address 0x4 - core index']
  #allocation1 [shape = 'u32[144,128]{1,0:T(1,128)}', space=vmem, size = 0x12000, scoped, tag = 'internal scratch']
  %s0 = inlined_call_operand.vmem [shape: bf16[256,48], index: 0, kind: input, shape index: {}]
  %s1 = inlined_call_operand.vmem [shape: bf16[48,128], index: 1, kind: input, shape index: {}]
  %s2 = inlined_call_operand.vmem [shape: f32[1,128], index: 2, kind: input, shape index: {}]
  %s3 = inlined_call_operand.vmem [shape: f32[1,128], index: 3, kind: input, shape index: {}]
  %s4 = inlined_call_operand.vmem [shape: f32[1,128], index: 4, kind: input, shape index: {}]
  %s5 = inlined_call_operand.vmem [shape: bf16[128,256], index: 5, kind: input, shape index: {}]
  %s6 = inlined_call_operand.vmem [shape: f32[1,256], index: 6, kind: input, shape index: {}]
  %s7 = inlined_call_operand.vmem [shape: bf16[256,128], index: 7, kind: input, shape index: {}]
  %s8 = inlined_call_operand.vmem [shape: f32[1,128], index: 8, kind: input, shape index: {}]
  %s9 = inlined_call_operand.vmem [shape: bf16[128,256], index: 9, kind: input, shape index: {}]
  %s10 = inlined_call_operand.vmem [shape: f32[1,256], index: 10, kind: input, shape index: {}]
  %s11 = inlined_call_operand.vmem [shape: bf16[256,256], index: 11, kind: output, shape index: {}]
  %s12 = sld [smem:[#allocation0]]
  $region54: #{full_mask2former_extractor.1} parent=0
    _
  %s14 = ssub.s32 1, %s12
  %s15 = scalar_select 0, %s14, %s12
  // Predicated region
  $region2: #{full_mask2former_extractor.1} parent=0 // pred_check
    _
  $region3: #{full_mask2former_extractor.1} parent=0 // pred_check_branch
    %17 = sbr.rel (0) target = $region5
  $region4: #{full_mask2former_extractor.1} parent=0 // pred_region
    _
  $region5: #{full_mask2former_extractor.1} parent=0 // pred_fallthru
    _
  // Predicated region
  $region6: #{full_mask2former_extractor.1} parent=0 // pred_check
    _
  $region7: #{full_mask2former_extractor.1} parent=0 // pred_check_branch
    %19 = sbr.rel (0) target = $region9
  $region8: #{full_mask2former_extractor.1} parent=0 // pred_region
    _
  $region9: #{full_mask2former_extractor.1} parent=0 // pred_fallthru
    _
  // Predicated region
  $region10: #{full_mask2former_extractor.1} parent=0 // pred_check
    _
  $region11: #{full_mask2former_extractor.1} parent=0 // pred_check_branch
    %21 = sbr.rel (0) target = $region13
  $region12: #{full_mask2former_extractor.1} parent=0 // pred_region
    _
  $region13: #{full_mask2former_extractor.1} parent=0 // pred_fallthru
    _
  // Predicated region
  $region14: #{full_mask2former_extractor.1} parent=0 // pred_check
    _
  $region15: #{full_mask2former_extractor.1} parent=0 // pred_check_branch
    %23 = sbr.rel (0) target = $region17
  $region16: #{full_mask2former_extractor.1} parent=0 // pred_region
    _
  $region17: #{full_mask2former_extractor.1} parent=0 // pred_fallthru
    _
  // Predicated region
  $region18: #{full_mask2former_extractor.1} parent=0 // pred_check
    _
  $region19: #{full_mask2former_extractor.1} parent=0 // pred_check_branch
    %25 = sbr.rel (0) target = $region21
  $region20: #{full_mask2former_extractor.1} parent=0 // pred_region
    _
  $region21: #{full_mask2former_extractor.1} parent=0 // pred_fallthru
    _
  // Predicated region
  $region22: #{full_mask2former_extractor.1} parent=0 // pred_check
    _
  $region23: #{full_mask2former_extractor.1} parent=0 // pred_check_branch
    %27 = sbr.rel (0) target = $region25
  $region24: #{full_mask2former_extractor.1} parent=0 // pred_region
    _
  $region25: #{full_mask2former_extractor.1} parent=0 // pred_fallthru
    _
  // Predicated region
  $region26: #{full_mask2former_extractor.1} parent=0 // pred_check
    _
  $region27: #{full_mask2former_extractor.1} parent=0 // pred_check_branch
    %29 = sbr.rel (0) target = $region29
  $region28: #{full_mask2former_extractor.1} parent=0 // pred_region
    _
  $region29: #{full_mask2former_extractor.1} parent=0 // pred_fallthru
    _
  // Predicated region
  $region30: #{full_mask2former_extractor.1} parent=0 // pred_check
    _
  $region31: #{full_mask2former_extractor.1} parent=0 // pred_check_branch
    %31 = sbr.rel (0) target = $region33
  $region32: #{full_mask2former_extractor.1} parent=0 // pred_region
    _
  $region33: #{full_mask2former_extractor.1} parent=0 // pred_fallthru
    _
  // Predicated region
  $region34: #{full_mask2former_extractor.1} parent=0 // pred_check
    _
  $region35: #{full_mask2former_extractor.1} parent=0 // pred_check_branch
    %33 = sbr.rel (0) target = $region37
  $region36: #{full_mask2former_extractor.1} parent=0 // pred_region
    _
  $region37: #{full_mask2former_extractor.1} parent=0 // pred_fallthru
    _
  // Predicated region
  $region38: #{full_mask2former_extractor.1} parent=0 // pred_check
    _
  $region39: #{full_mask2former_extractor.1} parent=0 // pred_check_branch
    %35 = sbr.rel (0) target = $region41
  $region40: #{full_mask2former_extractor.1} parent=0 // pred_region
    _
  $region41: #{full_mask2former_extractor.1} parent=0 // pred_fallthru
    _
  // Predicated region
  $region42: #{full_mask2former_extractor.1} parent=0 // pred_check
    _
  $region43: #{full_mask2former_extractor.1} parent=0 // pred_check_branch
    %37 = sbr.rel (0) target = $region45
  $region44: #{full_mask2former_extractor.1} parent=0 // pred_region
    _
  $region45: #{full_mask2former_extractor.1} parent=0 // pred_fallthru
    _
  %v43 = vld [vmem:[%s0] sm:$0xf]
  %v44 = vld [vmem:[%s0 + $0x4] sm:$0xf]
  %v45 = vld [vmem:[%s0 + $0x8] sm:$0xf]
  %v46 = vld [vmem:[%s0 + $0xc] sm:$0xf]
  %v47 = vld [vmem:[%s0 + $0x10] sm:$0xf]
  %v48 = vld [vmem:[%s0 + $0x14] sm:$0xf]
  %v49 = vld [vmem:[%s0 + $0x18] sm:$0xf]
  %v50 = vld [vmem:[%s0 + $0x1c] sm:$0xf]
  %v51 = vld [vmem:[%s0 + $0x20] sm:$0xf]
  %v52 = vld [vmem:[%s0 + $0x24] sm:$0xf]
  %v53 = vld [vmem:[%s0 + $0x28] sm:$0xf]
  %v54 = vld [vmem:[%s0 + $0x2c] sm:$0xf]
  %v55 = vld [vmem:[%s0 + $0x30] sm:$0xf]
  %v56 = vld [vmem:[%s0 + $0x34] sm:$0xf]
  %v57 = vld [vmem:[%s0 + $0x38] sm:$0xf]
  %v58 = vld [vmem:[%s0 + $0x3c] sm:$0xf]
  %v59 = vld [vmem:[%s0 + $0x40] sm:$0xf]
  %v60 = vld [vmem:[%s0 + $0x44] sm:$0xf]
  %v61 = vld [vmem:[%s0 + $0x48] sm:$0xf]
  %v62 = vld [vmem:[%s0 + $0x4c] sm:$0xf]
  %v63 = vld [vmem:[%s0 + $0x50] sm:$0xf]
  %v64 = vld [vmem:[%s0 + $0x54] sm:$0xf]
  %v65 = vld [vmem:[%s0 + $0x58] sm:$0xf]
  %v66 = vld [vmem:[%s0 + $0x5c] sm:$0xf]
  %v67 = vld [vmem:[%s0 + $0x60] sm:$0xf]
  %v68 = vld [vmem:[%s0 + $0x64] sm:$0xf]
  %v69 = vld [vmem:[%s0 + $0x68] sm:$0xf]
  %v70 = vld [vmem:[%s0 + $0x6c] sm:$0xf]
  %v71 = vld [vmem:[%s0 + $0x70] sm:$0xf]
  %v72 = vld [vmem:[%s0 + $0x74] sm:$0xf]
  %v73 = vld [vmem:[%s0 + $0x78] sm:$0xf]
  %v74 = vld [vmem:[%s0 + $0x7c] sm:$0xf]
  %v75 = vld [vmem:[%s1] sm:$0xf]
  %v76 = vld [vmem:[%s1 + $0x4] sm:$0xf]
  %v77 = vld [vmem:[%s1 + $0x8] sm:$0xf]
  %v78 = vld [vmem:[%s1 + $0xc] sm:$0xf]
  %v79 = vld [vmem:[%s1 + $0x10] sm:$0xf]
  %v80 = vld [vmem:[%s1 + $0x14] sm:$0xf]
  %v81 = vld [vmem:[%s2] sm:$0x1]
  %v83 = vlaneseq
  %v84 = vshrl.u32 %v83, 7
  %v85 = vsub.s32 0, %v84
  %v86 = vrot.slane %v81, %v85
  %v120 = vunpack.c.l.b16 %v43
  %v121 = vunpack.c.l.b16 %v44
  %v122 = vunpack.c.l.b16 %v45
  %v123 = vunpack.c.l.b16 %v46
  %v124 = vunpack.c.l.b16 %v47
  %v125 = vunpack.c.l.b16 %v48
  %v126 = vunpack.c.l.b16 %v49
  %v127 = vunpack.c.l.b16 %v50
  %v128 = vunpack.c.l.b16 %v51
  %v129 = vunpack.c.l.b16 %v52
  %v130 = vunpack.c.l.b16 %v53
  %v131 = vunpack.c.l.b16 %v54
  %v132 = vunpack.c.l.b16 %v55
  %v133 = vunpack.c.l.b16 %v56
  %v134 = vunpack.c.l.b16 %v57
  %v135 = vunpack.c.l.b16 %v58
  %v136 = vunpack.c.l.b16 %v59
  %v137 = vunpack.c.l.b16 %v60
  %v138 = vunpack.c.l.b16 %v61
  %v139 = vunpack.c.l.b16 %v62
  %v140 = vunpack.c.l.b16 %v63
  %v141 = vunpack.c.l.b16 %v64
  %v142 = vunpack.c.l.b16 %v65
  %v143 = vunpack.c.l.b16 %v66
  %v144 = vunpack.c.l.b16 %v67
  %v145 = vunpack.c.l.b16 %v68
  %v146 = vunpack.c.l.b16 %v69
  %v147 = vunpack.c.l.b16 %v70
  %v148 = vunpack.c.l.b16 %v71
  %v149 = vunpack.c.l.b16 %v72
  %v150 = vunpack.c.l.b16 %v73
  %v151 = vunpack.c.l.b16 %v74
  %v152 = vpack.c.b16 %v121, %v120
  %v153 = vpack.c.b16 %v123, %v122
  %v154 = vpack.c.b16 %v125, %v124
  %v155 = vpack.c.b16 %v127, %v126
  %v156 = vpack.c.b16 %v129, %v128
  %v157 = vpack.c.b16 %v131, %v130
  %v158 = vpack.c.b16 %v133, %v132
  %v159 = vpack.c.b16 %v135, %v134
  %v160 = vpack.c.b16 %v137, %v136
  %v161 = vpack.c.b16 %v139, %v138
  %v162 = vpack.c.b16 %v141, %v140
  %v163 = vpack.c.b16 %v143, %v142
  %v164 = vpack.c.b16 %v145, %v144
  %v165 = vpack.c.b16 %v147, %v146
  %v166 = vpack.c.b16 %v149, %v148
  %v167 = vpack.c.b16 %v151, %v150
  %v174 = vunpack.c.l.b16 %v75
  %v175 = vunpack.c.l.b16 %v76
  %v176 = vunpack.c.l.b16 %v77
  %v177 = vunpack.c.l.b16 %v78
  %v178 = vunpack.c.l.b16 %v79
  %v179 = vunpack.c.l.b16 %v80
  %v180 = vpack.c.b16 %v175, %v174
  %v181 = vpack.c.b16 %v177, %v176
  %v182 = vpack.c.b16 %v179, %v178
  %vm186 = vcmask 392192
  %v188 = vsel %vm186, %v152, 0
  %v191 = vsel %vm186, %v153, 0
  %v194 = vsel %vm186, %v154, 0
  %v197 = vsel %vm186, %v155, 0
  %v200 = vsel %vm186, %v156, 0
  %v203 = vsel %vm186, %v157, 0
  %v206 = vsel %vm186, %v158, 0
  %v209 = vsel %vm186, %v159, 0
  %v212 = vsel %vm186, %v160, 0
  %v215 = vsel %vm186, %v161, 0
  %v218 = vsel %vm186, %v162, 0
  %v221 = vsel %vm186, %v163, 0
  %v224 = vsel %vm186, %v164, 0
  %v227 = vsel %vm186, %v165, 0
  %v230 = vsel %vm186, %v166, 0
  %v233 = vsel %vm186, %v167, 0
  %235 = vmatprep.subr.bf16.mxu0 0
  %236 = vmatpush1.bf16.msra.mxu0 %v180
  %237 = vmatprep.subr.bf16.mxu0 0
  %238 = vmatpush1.bf16.msra.mxu0 %v181
  %239 = vmatprep.subr.bf16.mxu0 0
  %240 = vmatpush1.bf16.msra.mxu0 %v182
  %241 = vmatprep.subr.bf16.mxu0 0
  %242 = vmatpush1.bf16.msra.mxu0 0
  %243 = vmatprep.subr.bf16.mxu0 0
  %244 = vmatpush1.bf16.msra.mxu0 0
  %245 = vmatprep.subr.bf16.mxu0 0
  %246 = vmatpush1.bf16.msra.mxu0 0
  %247 = vmatprep.subr.bf16.mxu0 0
  %248 = vmatpush1.bf16.msra.mxu0 0
  %249 = vmatprep.subr.bf16.mxu0 0
  %250 = vmatpush1.bf16.msra.mxu0 0
  %251 = vmatprep.subr.bf16.mxu0 0
  %252 = vmatpush1.bf16.msra.mxu0 0
  %253 = vmatprep.subr.bf16.mxu0 0
  %254 = vmatpush1.bf16.msra.mxu0 0
  %255 = vmatprep.subr.bf16.mxu0 0
  %256 = vmatpush1.bf16.msra.mxu0 0
  %257 = vmatprep.subr.bf16.mxu0 0
  %258 = vmatpush1.bf16.msra.mxu0 0
  %259 = vmatprep.subr.bf16.mxu0 0
  %260 = vmatpush1.bf16.msra.mxu0 0
  %261 = vmatprep.subr.bf16.mxu0 0
  %262 = vmatpush1.bf16.msra.mxu0 0
  %263 = vmatprep.subr.bf16.mxu0 0
  %264 = vmatpush1.bf16.msra.mxu0 0
  %265 = vmatprep.subr.bf16.mxu0 0
  %266 = vmatpush1.bf16.msra.mxu0 0
  %267 = vmatprep.mubr.bf16.mxu0 0
  %268 = vmatmul.mubr.bf16.gmra.mrb[0].mxu0 %v188
  %v269 = vpop.f32.mrb[0].mxu0
  %v270 = vadd.f32 %v86, %v269
  %v271 = vpop.f32.mrb[0].mxu0
  %v272 = vpop.f32.mrb[0].mxu0
  %v273 = vadd.f32 %v86, %v272
  %v274 = vpop.f32.mrb[0].mxu0
  %275 = vmatprep.mubr.bf16.mxu0 0
  %276 = vmatmul.mubr.bf16.gmra.mrb[0].mxu0 %v191
  %v277 = vpop.f32.mrb[0].mxu0
  %v278 = vadd.f32 %v86, %v277
  %v279 = vpop.f32.mrb[0].mxu0
  %v280 = vpop.f32.mrb[0].mxu0
  %v281 = vadd.f32 %v86, %v280
  %v282 = vpop.f32.mrb[0].mxu0
  %283 = vmatprep.mubr.bf16.mxu0 0
  %284 = vmatmul.mubr.bf16.gmra.mrb[0].mxu0 %v194
  %v285 = vpop.f32.mrb[0].mxu0
  %v286 = vadd.f32 %v86, %v285
  %v287 = vpop.f32.mrb[0].mxu0
  %v288 = vpop.f32.mrb[0].mxu0
  %v289 = vadd.f32 %v86, %v288
  %v290 = vpop.f32.mrb[0].mxu0
  %291 = vmatprep.mubr.bf16.mxu0 0
  %292 = vmatmul.mubr.bf16.gmra.mrb[0].mxu0 %v197
  %v293 = vpop.f32.mrb[0].mxu0
  %v294 = vadd.f32 %v86, %v293
  %v295 = vpop.f32.mrb[0].mxu0
  %v296 = vpop.f32.mrb[0].mxu0
  %v297 = vadd.f32 %v86, %v296
  %v298 = vpop.f32.mrb[0].mxu0
  %299 = vmatprep.mubr.bf16.mxu0 0
  %300 = vmatmul.mubr.bf16.gmra.mrb[0].mxu0 %v200
  %v301 = vpop.f32.mrb[0].mxu0
  %v302 = vadd.f32 %v86, %v301
  %v303 = vpop.f32.mrb[0].mxu0
  %v304 = vpop.f32.mrb[0].mxu0
  %v305 = vadd.f32 %v86, %v304
  %v306 = vpop.f32.mrb[0].mxu0
  %307 = vmatprep.mubr.bf16.mxu0 0
  %308 = vmatmul.mubr.bf16.gmra.mrb[0].mxu0 %v203
  %v309 = vpop.f32.mrb[0].mxu0
  %v310 = vadd.f32 %v86, %v309
  %v311 = vpop.f32.mrb[0].mxu0
  %v312 = vpop.f32.mrb[0].mxu0
  %v313 = vadd.f32 %v86, %v312
  %v314 = vpop.f32.mrb[0].mxu0
  %315 = vmatprep.mubr.bf16.mxu0 0
  %316 = vmatmul.mubr.bf16.gmra.mrb[0].mxu0 %v206
  %v317 = vpop.f32.mrb[0].mxu0
  %v318 = vadd.f32 %v86, %v317
  %v319 = vpop.f32.mrb[0].mxu0
  %v320 = vpop.f32.mrb[0].mxu0
  %v321 = vadd.f32 %v86, %v320
  %v322 = vpop.f32.mrb[0].mxu0
  %323 = vmatprep.mubr.bf16.mxu0 0
  %324 = vmatmul.mubr.bf16.gmra.mrb[0].mxu0 %v209
  %v325 = vpop.f32.mrb[0].mxu0
  %v326 = vadd.f32 %v86, %v325
  %v327 = vpop.f32.mrb[0].mxu0
  %v328 = vpop.f32.mrb[0].mxu0
  %v329 = vadd.f32 %v86, %v328
  %v330 = vpop.f32.mrb[0].mxu0
  %331 = vmatprep.mubr.bf16.mxu0 0
  %332 = vmatmul.mubr.bf16.gmra.mrb[0].mxu0 %v212
  %v333 = vpop.f32.mrb[0].mxu0
  %v334 = vadd.f32 %v86, %v333
  %v335 = vpop.f32.mrb[0].mxu0
  %v336 = vpop.f32.mrb[0].mxu0
  %v337 = vadd.f32 %v86, %v336
  %v338 = vpop.f32.mrb[0].mxu0
  %339 = vmatprep.mubr.bf16.mxu0 0
  %340 = vmatmul.mubr.bf16.gmra.mrb[0].mxu0 %v215
  %v341 = vpop.f32.mrb[0].mxu0
  %v342 = vadd.f32 %v86, %v341
  %v343 = vpop.f32.mrb[0].mxu0
  %v344 = vpop.f32.mrb[0].mxu0
  %v345 = vadd.f32 %v86, %v344
  %v346 = vpop.f32.mrb[0].mxu0
  %347 = vmatprep.mubr.bf16.mxu0 0
  %348 = vmatmul.mubr.bf16.gmra.mrb[0].mxu0 %v218
  %v349 = vpop.f32.mrb[0].mxu0
  %v350 = vadd.f32 %v86, %v349
  %v351 = vpop.f32.mrb[0].mxu0
  %v352 = vpop.f32.mrb[0].mxu0
  %v353 = vadd.f32 %v86, %v352
  %v354 = vpop.f32.mrb[0].mxu0
  %355 = vmatprep.mubr.bf16.mxu0 0
  %356 = vmatmul.mubr.bf16.gmra.mrb[0].mxu0 %v221
  %v357 = vpop.f32.mrb[0].mxu0
  %v358 = vadd.f32 %v86, %v357
  %v359 = vpop.f32.mrb[0].mxu0
  %v360 = vpop.f32.mrb[0].mxu0
  %v361 = vadd.f32 %v86, %v360
  %v362 = vpop.f32.mrb[0].mxu0
  %363 = vmatprep.mubr.bf16.mxu0 0
  %364 = vmatmul.mubr.bf16.gmra.mrb[0].mxu0 %v224
  %v365 = vpop.f32.mrb[0].mxu0
  %v366 = vadd.f32 %v86, %v365
  %v367 = vpop.f32.mrb[0].mxu0
  %v368 = vpop.f32.mrb[0].mxu0
  %v369 = vadd.f32 %v86, %v368
  %v370 = vpop.f32.mrb[0].mxu0
  %371 = vmatprep.mubr.bf16.mxu0 0
  %372 = vmatmul.mubr.bf16.gmra.mrb[0].mxu0 %v227
  %v373 = vpop.f32.mrb[0].mxu0
  %v374 = vadd.f32 %v86, %v373
  %v375 = vpop.f32.mrb[0].mxu0
  %v376 = vpop.f32.mrb[0].mxu0
  %v377 = vadd.f32 %v86, %v376
  %v378 = vpop.f32.mrb[0].mxu0
  %379 = vmatprep.mubr.bf16.mxu0 0
  %380 = vmatmul.mubr.bf16.gmra.mrb[0].mxu0 %v230
  %v381 = vpop.f32.mrb[0].mxu0
  %v382 = vadd.f32 %v86, %v381
  %v383 = vpop.f32.mrb[0].mxu0
  %v384 = vpop.f32.mrb[0].mxu0
  %v385 = vadd.f32 %v86, %v384
  %v386 = vpop.f32.mrb[0].mxu0
  %387 = vmatprep.mubr.bf16.mxu0 0
  %388 = vmatmul.mubr.bf16.gmra.mrb[0].mxu0 %v233
  %v389 = vpop.f32.mrb[0].mxu0
  %v390 = vadd.f32 %v86, %v389
  %v391 = vpop.f32.mrb[0].mxu0
  %v392 = vpop.f32.mrb[0].mxu0
  %v393 = vadd.f32 %v86, %v392
  %v394 = vpop.f32.mrb[0].mxu0
  %395 = vdwg.mxu0
  %396 = vadd.xlane.f32.xlu0 %v270
  %v397 = vpop.xlane.xlu0 %396
  %398 = vadd.xlane.f32.xlu0 %v273
  %v399 = vpop.xlane.xlu0 %398
  %400 = vadd.xlane.f32.xlu0 %v278
  %v401 = vpop.xlane.xlu0 %400
  %402 = vadd.xlane.f32.xlu0 %v281
  %v403 = vpop.xlane.xlu0 %402
  %404 = vadd.xlane.f32.xlu0 %v286
  %v405 = vpop.xlane.xlu0 %404
  %406 = vadd.xlane.f32.xlu0 %v289
  %v407 = vpop.xlane.xlu0 %406
  %408 = vadd.xlane.f32.xlu0 %v294
  %v409 = vpop.xlane.xlu0 %408
  %410 = vadd.xlane.f32.xlu0 %v297
  %v411 = vpop.xlane.xlu0 %410
  %412 = vadd.xlane.f32.xlu0 %v302
  %v413 = vpop.xlane.xlu0 %412
  %414 = vadd.xlane.f32.xlu0 %v305
  %v415 = vpop.xlane.xlu0 %414
  %416 = vadd.xlane.f32.xlu0 %v310
  %v417 = vpop.xlane.xlu0 %416
  %418 = vadd.xlane.f32.xlu0 %v313
  %v419 = vpop.xlane.xlu0 %418
  %420 = vadd.xlane.f32.xlu0 %v318
  %v421 = vpop.xlane.xlu0 %420
  %422 = vadd.xlane.f32.xlu0 %v321
  %v423 = vpop.xlane.xlu0 %422
  %424 = vadd.xlane.f32.xlu0 %v326
  %v425 = vpop.xlane.xlu0 %424
  %426 = vadd.xlane.f32.xlu0 %v329
  %v427 = vpop.xlane.xlu0 %426
  %428 = vadd.xlane.f32.xlu0 %v334
  %v429 = vpop.xlane.xlu0 %428
  %430 = vadd.xlane.f32.xlu0 %v337
  %v431 = vpop.xlane.xlu0 %430
  %432 = vadd.xlane.f32.xlu0 %v342
  %v433 = vpop.xlane.xlu0 %432
  %434 = vadd.xlane.f32.xlu0 %v345
  %v435 = vpop.xlane.xlu0 %434
  %436 = vadd.xlane.f32.xlu0 %v350
  %v437 = vpop.xlane.xlu0 %436
  %438 = vadd.xlane.f32.xlu0 %v353
  %v439 = vpop.xlane.xlu0 %438
  %440 = vadd.xlane.f32.xlu0 %v358
  %v441 = vpop.xlane.xlu0 %440
  %442 = vadd.xlane.f32.xlu0 %v361
  %v443 = vpop.xlane.xlu0 %442
  %444 = vadd.xlane.f32.xlu0 %v366
  %v445 = vpop.xlane.xlu0 %444
  %446 = vadd.xlane.f32.xlu0 %v369
  %v447 = vpop.xlane.xlu0 %446
  %448 = vadd.xlane.f32.xlu0 %v374
  %v449 = vpop.xlane.xlu0 %448
  %450 = vadd.xlane.f32.xlu0 %v377
  %v451 = vpop.xlane.xlu0 %450
  %452 = vadd.xlane.f32.xlu0 %v382
  %v453 = vpop.xlane.xlu0 %452
  %454 = vadd.xlane.f32.xlu0 %v385
  %v455 = vpop.xlane.xlu0 %454
  %456 = vadd.xlane.f32.xlu0 %v390
  %v457 = vpop.xlane.xlu0 %456
  %458 = vadd.xlane.f32.xlu0 %v393
  %v459 = vpop.xlane.xlu0 %458
  %v460 = vrcp.pop 128.0
  %v461 = vmul.f32 %v397, %v460
  %v462 = vmul.f32 %v399, %v460
  %v463 = vmul.f32 %v401, %v460
  %v464 = vmul.f32 %v403, %v460
  %v465 = vmul.f32 %v405, %v460
  %v466 = vmul.f32 %v407, %v460
  %v467 = vmul.f32 %v409, %v460
  %v468 = vmul.f32 %v411, %v460
  %v469 = vmul.f32 %v413, %v460
  %v470 = vmul.f32 %v415, %v460
  %v471 = vmul.f32 %v417, %v460
  %v472 = vmul.f32 %v419, %v460
  %v473 = vmul.f32 %v421, %v460
  %v474 = vmul.f32 %v423, %v460
  %v475 = vmul.f32 %v425, %v460
  %v476 = vmul.f32 %v427, %v460
  %v477 = vmul.f32 %v429, %v460
  %v478 = vmul.f32 %v431, %v460
  %v479 = vmul.f32 %v433, %v460
  %v480 = vmul.f32 %v435, %v460
  %v481 = vmul.f32 %v437, %v460
  %v482 = vmul.f32 %v439, %v460
  %v483 = vmul.f32 %v441, %v460
  %v484 = vmul.f32 %v443, %v460
  %v485 = vmul.f32 %v445, %v460
  %v486 = vmul.f32 %v447, %v460
  %v487 = vmul.f32 %v449, %v460
  %v488 = vmul.f32 %v451, %v460
  %v489 = vmul.f32 %v453, %v460
  %v490 = vmul.f32 %v455, %v460
  %v491 = vmul.f32 %v457, %v460
  %v492 = vmul.f32 %v459, %v460
  %v493 = vmul.f32 %v270, %v270
  %v494 = vmul.f32 %v273, %v273
  %v495 = vmul.f32 %v278, %v278
  %v496 = vmul.f32 %v281, %v281
  %v497 = vmul.f32 %v286, %v286
  %v498 = vmul.f32 %v289, %v289
  %v499 = vmul.f32 %v294, %v294
  %v500 = vmul.f32 %v297, %v297
  %v501 = vmul.f32 %v302, %v302
  %v502 = vmul.f32 %v305, %v305
  %v503 = vmul.f32 %v310, %v310
  %v504 = vmul.f32 %v313, %v313
  %v505 = vmul.f32 %v318, %v318
  %v506 = vmul.f32 %v321, %v321
  %v507 = vmul.f32 %v326, %v326
  %v508 = vmul.f32 %v329, %v329
  %v509 = vmul.f32 %v334, %v334
  %v510 = vmul.f32 %v337, %v337
  %v511 = vmul.f32 %v342, %v342
  %v512 = vmul.f32 %v345, %v345
  %v513 = vmul.f32 %v350, %v350
  %v514 = vmul.f32 %v353, %v353
  %v515 = vmul.f32 %v358, %v358
  %v516 = vmul.f32 %v361, %v361
  %v517 = vmul.f32 %v366, %v366
  %v518 = vmul.f32 %v369, %v369
  %v519 = vmul.f32 %v374, %v374
  %v520 = vmul.f32 %v377, %v377
  %v521 = vmul.f32 %v382, %v382
  %v522 = vmul.f32 %v385, %v385
  %v523 = vmul.f32 %v390, %v390
  %v524 = vmul.f32 %v393, %v393
  %525 = vadd.xlane.f32.xlu0 %v493
  %v526 = vpop.xlane.xlu0 %525
  %527 = vadd.xlane.f32.xlu0 %v494
  %v528 = vpop.xlane.xlu0 %527
  %529 = vadd.xlane.f32.xlu0 %v495
  %v530 = vpop.xlane.xlu0 %529
  %531 = vadd.xlane.f32.xlu0 %v496
  %v532 = vpop.xlane.xlu0 %531
  %533 = vadd.xlane.f32.xlu0 %v497
  %v534 = vpop.xlane.xlu0 %533
  %535 = vadd.xlane.f32.xlu0 %v498
  %v536 = vpop.xlane.xlu0 %535
  %537 = vadd.xlane.f32.xlu0 %v499
  %v538 = vpop.xlane.xlu0 %537
  %539 = vadd.xlane.f32.xlu0 %v500
  %v540 = vpop.xlane.xlu0 %539
  %541 = vadd.xlane.f32.xlu0 %v501
  %v542 = vpop.xlane.xlu0 %541
  %543 = vadd.xlane.f32.xlu0 %v502
  %v544 = vpop.xlane.xlu0 %543
  %545 = vadd.xlane.f32.xlu0 %v503
  %v546 = vpop.xlane.xlu0 %545
  %547 = vadd.xlane.f32.xlu0 %v504
  %v548 = vpop.xlane.xlu0 %547
  %549 = vadd.xlane.f32.xlu0 %v505
  %v550 = vpop.xlane.xlu0 %549
  %551 = vadd.xlane.f32.xlu0 %v506
  %v552 = vpop.xlane.xlu0 %551
  %553 = vadd.xlane.f32.xlu0 %v507
  %v554 = vpop.xlane.xlu0 %553
  %555 = vadd.xlane.f32.xlu0 %v508
  %v556 = vpop.xlane.xlu0 %555
  %557 = vadd.xlane.f32.xlu0 %v509
  %v558 = vpop.xlane.xlu0 %557
  %559 = vadd.xlane.f32.xlu0 %v510
  %v560 = vpop.xlane.xlu0 %559
  %561 = vadd.xlane.f32.xlu0 %v511
  %v562 = vpop.xlane.xlu0 %561
  %563 = vadd.xlane.f32.xlu0 %v512
  %v564 = vpop.xlane.xlu0 %563
  %565 = vadd.xlane.f32.xlu0 %v513
  %v566 = vpop.xlane.xlu0 %565
  %567 = vadd.xlane.f32.xlu0 %v514
  %v568 = vpop.xlane.xlu0 %567
  %569 = vadd.xlane.f32.xlu0 %v515
  %v570 = vpop.xlane.xlu0 %569
  %571 = vadd.xlane.f32.xlu0 %v516
  %v572 = vpop.xlane.xlu0 %571
  %573 = vadd.xlane.f32.xlu0 %v517
  %v574 = vpop.xlane.xlu0 %573
  %575 = vadd.xlane.f32.xlu0 %v518
  %v576 = vpop.xlane.xlu0 %575
  %577 = vadd.xlane.f32.xlu0 %v519
  %v578 = vpop.xlane.xlu0 %577
  %579 = vadd.xlane.f32.xlu0 %v520
  %v580 = vpop.xlane.xlu0 %579
  %581 = vadd.xlane.f32.xlu0 %v521
  %v582 = vpop.xlane.xlu0 %581
  %583 = vadd.xlane.f32.xlu0 %v522
  %v584 = vpop.xlane.xlu0 %583
  %585 = vadd.xlane.f32.xlu0 %v523
  %v586 = vpop.xlane.xlu0 %585
  %587 = vadd.xlane.f32.xlu0 %v524
  %v588 = vpop.xlane.xlu0 %587
  %v589 = vmul.f32 %v526, %v460
  %v590 = vmul.f32 %v528, %v460
  %v591 = vmul.f32 %v530, %v460
  %v592 = vmul.f32 %v532, %v460
  %v593 = vmul.f32 %v534, %v460
  %v594 = vmul.f32 %v536, %v460
  %v595 = vmul.f32 %v538, %v460
  %v596 = vmul.f32 %v540, %v460
  %v597 = vmul.f32 %v542, %v460
  %v598 = vmul.f32 %v544, %v460
  %v599 = vmul.f32 %v546, %v460
  %v600 = vmul.f32 %v548, %v460
  %v601 = vmul.f32 %v550, %v460
  %v602 = vmul.f32 %v552, %v460
  %v603 = vmul.f32 %v554, %v460
  %v604 = vmul.f32 %v556, %v460
  %v605 = vmul.f32 %v558, %v460
  %v606 = vmul.f32 %v560, %v460
  %v607 = vmul.f32 %v562, %v460
  %v608 = vmul.f32 %v564, %v460
  %v609 = vmul.f32 %v566, %v460
  %v610 = vmul.f32 %v568, %v460
  %v611 = vmul.f32 %v570, %v460
  %v612 = vmul.f32 %v572, %v460
  %v613 = vmul.f32 %v574, %v460
  %v614 = vmul.f32 %v576, %v460
  %v615 = vmul.f32 %v578, %v460
  %v616 = vmul.f32 %v580, %v460
  %v617 = vmul.f32 %v582, %v460
  %v618 = vmul.f32 %v584, %v460
  %v619 = vmul.f32 %v586, %v460
  %v620 = vmul.f32 %v588, %v460
  %v621 = vmul.f32 %v461, %v461
  %v622 = vmul.f32 %v462, %v462
  %v623 = vmul.f32 %v463, %v463
  %v624 = vmul.f32 %v464, %v464
  %v625 = vmul.f32 %v465, %v465
  %v626 = vmul.f32 %v466, %v466
  %v627 = vmul.f32 %v467, %v467
  %v628 = vmul.f32 %v468, %v468
  %v629 = vmul.f32 %v469, %v469
  %v630 = vmul.f32 %v470, %v470
  %v631 = vmul.f32 %v471, %v471
  %v632 = vmul.f32 %v472, %v472
  %v633 = vmul.f32 %v473, %v473
  %v634 = vmul.f32 %v474, %v474
  %v635 = vmul.f32 %v475, %v475
  %v636 = vmul.f32 %v476, %v476
  %v637 = vmul.f32 %v477, %v477
  %v638 = vmul.f32 %v478, %v478
  %v639 = vmul.f32 %v479, %v479
  %v640 = vmul.f32 %v480, %v480
  %v641 = vmul.f32 %v481, %v481
  %v642 = vmul.f32 %v482, %v482
  %v643 = vmul.f32 %v483, %v483
  %v644 = vmul.f32 %v484, %v484
  %v645 = vmul.f32 %v485, %v485
  %v646 = vmul.f32 %v486, %v486
  %v647 = vmul.f32 %v487, %v487
  %v648 = vmul.f32 %v488, %v488
  %v649 = vmul.f32 %v489, %v489
  %v650 = vmul.f32 %v490, %v490
  %v651 = vmul.f32 %v491, %v491
  %v652 = vmul.f32 %v492, %v492
  %v653 = vsub.f32 %v589, %v621
  %v654 = vsub.f32 %v590, %v622
  %v655 = vsub.f32 %v591, %v623
  %v656 = vsub.f32 %v592, %v624
  %v657 = vsub.f32 %v593, %v625
  %v658 = vsub.f32 %v594, %v626
  %v659 = vsub.f32 %v595, %v627
  %v660 = vsub.f32 %v596, %v628
  %v661 = vsub.f32 %v597, %v629
  %v662 = vsub.f32 %v598, %v630
  %v663 = vsub.f32 %v599, %v631
  %v664 = vsub.f32 %v600, %v632
  %v665 = vsub.f32 %v601, %v633
  %v666 = vsub.f32 %v602, %v634
  %v667 = vsub.f32 %v603, %v635
  %v668 = vsub.f32 %v604, %v636
  %v669 = vsub.f32 %v605, %v637
  %v670 = vsub.f32 %v606, %v638
  %v671 = vsub.f32 %v607, %v639
  %v672 = vsub.f32 %v608, %v640
  %v673 = vsub.f32 %v609, %v641
  %v674 = vsub.f32 %v610, %v642
  %v675 = vsub.f32 %v611, %v643
  %v676 = vsub.f32 %v612, %v644
  %v677 = vsub.f32 %v613, %v645
  %v678 = vsub.f32 %v614, %v646
  %v679 = vsub.f32 %v615, %v647
  %v680 = vsub.f32 %v616, %v648
  %v681 = vsub.f32 %v617, %v649
  %v682 = vsub.f32 %v618, %v650
  %v683 = vsub.f32 %v619, %v651
  %v684 = vsub.f32 %v620, %v652
  %v685 = vsub.f32 %v270, %v461
  %v686 = vsub.f32 %v273, %v462
  %v687 = vsub.f32 %v278, %v463
  %v688 = vsub.f32 %v281, %v464
  %v689 = vsub.f32 %v286, %v465
  %v690 = vsub.f32 %v289, %v466
  %v691 = vsub.f32 %v294, %v467
  %v692 = vsub.f32 %v297, %v468
  %v693 = vsub.f32 %v302, %v469
  %v694 = vsub.f32 %v305, %v470
  %v695 = vsub.f32 %v310, %v471
  %v696 = vsub.f32 %v313, %v472
  %v697 = vsub.f32 %v318, %v473
  %v698 = vsub.f32 %v321, %v474
  %v699 = vsub.f32 %v326, %v475
  %v700 = vsub.f32 %v329, %v476
  %v701 = vsub.f32 %v334, %v477
  %v702 = vsub.f32 %v337, %v478
  %v703 = vsub.f32 %v342, %v479
  %v704 = vsub.f32 %v345, %v480
  %v705 = vsub.f32 %v350, %v481
  %v706 = vsub.f32 %v353, %v482
  %v707 = vsub.f32 %v358, %v483
  %v708 = vsub.f32 %v361, %v484
  %v709 = vsub.f32 %v366, %v485
  %v710 = vsub.f32 %v369, %v486
  %v711 = vsub.f32 %v374, %v487
  %v712 = vsub.f32 %v377, %v488
  %v713 = vsub.f32 %v382, %v489
  %v714 = vsub.f32 %v385, %v490
  %v715 = vsub.f32 %v390, %v491
  %v716 = vsub.f32 %v393, %v492
  %v717 = vadd.f32 %v653, 1e-05
  %v718 = vadd.f32 %v654, 1e-05
  %v719 = vadd.f32 %v655, 1e-05
  %v720 = vadd.f32 %v656, 1e-05
  %v721 = vadd.f32 %v657, 1e-05
  %v722 = vadd.f32 %v658, 1e-05
  %v723 = vadd.f32 %v659, 1e-05
  %v724 = vadd.f32 %v660, 1e-05
  %v725 = vadd.f32 %v661, 1e-05
  %v726 = vadd.f32 %v662, 1e-05
  %v727 = vadd.f32 %v663, 1e-05
  %v728 = vadd.f32 %v664, 1e-05
  %v729 = vadd.f32 %v665, 1e-05
  %v730 = vadd.f32 %v666, 1e-05
  %v731 = vadd.f32 %v667, 1e-05
  %v732 = vadd.f32 %v668, 1e-05
  %v733 = vadd.f32 %v669, 1e-05
  %v734 = vadd.f32 %v670, 1e-05
  %v735 = vadd.f32 %v671, 1e-05
  %v736 = vadd.f32 %v672, 1e-05
  %v737 = vadd.f32 %v673, 1e-05
  %v738 = vadd.f32 %v674, 1e-05
  %v739 = vadd.f32 %v675, 1e-05
  %v740 = vadd.f32 %v676, 1e-05
  %v741 = vadd.f32 %v677, 1e-05
  %v742 = vadd.f32 %v678, 1e-05
  %v743 = vadd.f32 %v679, 1e-05
  %v744 = vadd.f32 %v680, 1e-05
  %v745 = vadd.f32 %v681, 1e-05
  %v746 = vadd.f32 %v682, 1e-05
  %v747 = vadd.f32 %v683, 1e-05
  %v748 = vadd.f32 %v684, 1e-05
  %v749 = vrsqrt.pop %v717
  %v750 = vrsqrt.pop %v718
  %v751 = vrsqrt.pop %v719
  %v752 = vrsqrt.pop %v720
  %v753 = vrsqrt.pop %v721
  %v754 = vrsqrt.pop %v722
  %v755 = vrsqrt.pop %v723
  %v756 = vrsqrt.pop %v724
  %v757 = vrsqrt.pop %v725
  %v758 = vrsqrt.pop %v726
  %v759 = vrsqrt.pop %v727
  %v760 = vrsqrt.pop %v728
  %v761 = vrsqrt.pop %v729
  %v762 = vrsqrt.pop %v730
  %v763 = vrsqrt.pop %v731
  %v764 = vrsqrt.pop %v732
  %v765 = vrsqrt.pop %v733
  %v766 = vrsqrt.pop %v734
  %v767 = vrsqrt.pop %v735
  %v768 = vrsqrt.pop %v736
  %v769 = vrsqrt.pop %v737
  %v770 = vrsqrt.pop %v738
  %v771 = vrsqrt.pop %v739
  %v772 = vrsqrt.pop %v740
  %v773 = vrsqrt.pop %v741
  %v774 = vrsqrt.pop %v742
  %v775 = vrsqrt.pop %v743
  %v776 = vrsqrt.pop %v744
  %v777 = vrsqrt.pop %v745
  %v778 = vrsqrt.pop %v746
  %v779 = vrsqrt.pop %v747
  %v780 = vrsqrt.pop %v748
  %v781 = vmul.f32 %v685, %v749
  %v782 = vmul.f32 %v686, %v750
  %v783 = vmul.f32 %v687, %v751
  %v784 = vmul.f32 %v688, %v752
  %v785 = vmul.f32 %v689, %v753
  %v786 = vmul.f32 %v690, %v754
  %v787 = vmul.f32 %v691, %v755
  %v788 = vmul.f32 %v692, %v756
  %v789 = vmul.f32 %v693, %v757
  %v790 = vmul.f32 %v694, %v758
  %v791 = vmul.f32 %v695, %v759
  %v792 = vmul.f32 %v696, %v760
  %v793 = vmul.f32 %v697, %v761
  %v794 = vmul.f32 %v698, %v762
  %v795 = vmul.f32 %v699, %v763
  %v796 = vmul.f32 %v700, %v764
  %v797 = vmul.f32 %v701, %v765
  %v798 = vmul.f32 %v702, %v766
  %v799 = vmul.f32 %v703, %v767
  %v800 = vmul.f32 %v704, %v768
  %v801 = vmul.f32 %v705, %v769
  %v802 = vmul.f32 %v706, %v770
  %v803 = vmul.f32 %v707, %v771
  %v804 = vmul.f32 %v708, %v772
  %v805 = vmul.f32 %v709, %v773
  %v806 = vmul.f32 %v710, %v774
  %v807 = vmul.f32 %v711, %v775
  %v808 = vmul.f32 %v712, %v776
  %v809 = vmul.f32 %v713, %v777
  %v810 = vmul.f32 %v714, %v778
  %v811 = vmul.f32 %v715, %v779
  %v812 = vmul.f32 %v716, %v780
  %v813 = vpack.c.bf16 %v782, %v781
  %v814 = vpack.c.bf16 %v784, %v783
  %v815 = vpack.c.bf16 %v786, %v785
  %v816 = vpack.c.bf16 %v788, %v787
  %v817 = vpack.c.bf16 %v790, %v789
  %v818 = vpack.c.bf16 %v792, %v791
  %v819 = vpack.c.bf16 %v794, %v793
  %v820 = vpack.c.bf16 %v796, %v795
  %v821 = vpack.c.bf16 %v798, %v797
  %v822 = vpack.c.bf16 %v800, %v799
  %v823 = vpack.c.bf16 %v802, %v801
  %v824 = vpack.c.bf16 %v804, %v803
  %v825 = vpack.c.bf16 %v806, %v805
  %v826 = vpack.c.bf16 %v808, %v807
  %v827 = vpack.c.bf16 %v810, %v809
  %v828 = vpack.c.bf16 %v812, %v811
  %v829 = vld [vmem:[%s3] sm:$0x1]
  %v830 = vpack.c.bf16 %v829, %v829
  %v832 = vpack.i.b16 %v830, %v830
  %v834 = vlaneseq
  %v835 = vshrl.u32 %v834, 7
  %v836 = vsub.s32 0, %v835
  %v837 = vrot.slane %v832, %v836
  %v838 = vmul.bf16 %v813, %v837
  %v839 = vmul.bf16 %v814, %v837
  %v840 = vmul.bf16 %v815, %v837
  %v841 = vmul.bf16 %v816, %v837
  %v842 = vmul.bf16 %v817, %v837
  %v843 = vmul.bf16 %v818, %v837
  %v844 = vmul.bf16 %v819, %v837
  %v845 = vmul.bf16 %v820, %v837
  %v846 = vmul.bf16 %v821, %v837
  %v847 = vmul.bf16 %v822, %v837
  %v848 = vmul.bf16 %v823, %v837
  %v849 = vmul.bf16 %v824, %v837
  %v850 = vmul.bf16 %v825, %v837
  %v851 = vmul.bf16 %v826, %v837
  %v852 = vmul.bf16 %v827, %v837
  %v853 = vmul.bf16 %v828, %v837
  %v854 = vld [vmem:[%s4] sm:$0x1]
  %v855 = vpack.c.bf16 %v854, %v854
  %v857 = vpack.i.b16 %v855, %v855
  %v859 = vlaneseq
  %v860 = vshrl.u32 %v859, 7
  %v861 = vsub.s32 0, %v860
  %v862 = vrot.slane %v857, %v861
  %v863 = vadd.bf16 %v838, %v862
  %v864 = vadd.bf16 %v839, %v862
  %v865 = vadd.bf16 %v840, %v862
  %v866 = vadd.bf16 %v841, %v862
  %v867 = vadd.bf16 %v842, %v862
  %v868 = vadd.bf16 %v843, %v862
  %v869 = vadd.bf16 %v844, %v862
  %v870 = vadd.bf16 %v845, %v862
  %v871 = vadd.bf16 %v846, %v862
  %v872 = vadd.bf16 %v847, %v862
  %v873 = vadd.bf16 %v848, %v862
  %v874 = vadd.bf16 %v849, %v862
  %v875 = vadd.bf16 %v850, %v862
  %v876 = vadd.bf16 %v851, %v862
  %v877 = vadd.bf16 %v852, %v862
  %v878 = vadd.bf16 %v853, %v862
  %v879 = vld [vmem:[%s5] sm:$0xff]
  %v880 = vld [vmem:[%s5 + $0x8] sm:$0xff]
  %v881 = vld [vmem:[%s5 + $0x10] sm:$0xff]
  %v882 = vld [vmem:[%s5 + $0x18] sm:$0xff]
  %v883 = vld [vmem:[%s5 + $0x20] sm:$0xff]
  %v884 = vld [vmem:[%s5 + $0x28] sm:$0xff]
  %v885 = vld [vmem:[%s5 + $0x30] sm:$0xff]
  %v886 = vld [vmem:[%s5 + $0x38] sm:$0xff]
  %v887 = vld [vmem:[%s5 + $0x40] sm:$0xff]
  %v888 = vld [vmem:[%s5 + $0x48] sm:$0xff]
  %v889 = vld [vmem:[%s5 + $0x50] sm:$0xff]
  %v890 = vld [vmem:[%s5 + $0x58] sm:$0xff]
  %v891 = vld [vmem:[%s5 + $0x60] sm:$0xff]
  %v892 = vld [vmem:[%s5 + $0x68] sm:$0xff]
  %v893 = vld [vmem:[%s5 + $0x70] sm:$0xff]
  %v894 = vld [vmem:[%s5 + $0x78] sm:$0xff]
  %v911 = vunpack.c.l.b16 %v879
  %v912 = vunpack.c.h.b16 %v879
  %v913 = vunpack.c.l.b16 %v880
  %v914 = vunpack.c.h.b16 %v880
  %v915 = vunpack.c.l.b16 %v881
  %v916 = vunpack.c.h.b16 %v881
  %v917 = vunpack.c.l.b16 %v882
  %v918 = vunpack.c.h.b16 %v882
  %v919 = vunpack.c.l.b16 %v883
  %v920 = vunpack.c.h.b16 %v883
  %v921 = vunpack.c.l.b16 %v884
  %v922 = vunpack.c.h.b16 %v884
  %v923 = vunpack.c.l.b16 %v885
  %v924 = vunpack.c.h.b16 %v885
  %v925 = vunpack.c.l.b16 %v886
  %v926 = vunpack.c.h.b16 %v886
  %v927 = vunpack.c.l.b16 %v887
  %v928 = vunpack.c.h.b16 %v887
  %v929 = vunpack.c.l.b16 %v888
  %v930 = vunpack.c.h.b16 %v888
  %v931 = vunpack.c.l.b16 %v889
  %v932 = vunpack.c.h.b16 %v889
  %v933 = vunpack.c.l.b16 %v890
  %v934 = vunpack.c.h.b16 %v890
  %v935 = vunpack.c.l.b16 %v891
  %v936 = vunpack.c.h.b16 %v891
  %v937 = vunpack.c.l.b16 %v892
  %v938 = vunpack.c.h.b16 %v892
  %v939 = vunpack.c.l.b16 %v893
  %v940 = vunpack.c.h.b16 %v893
  %v941 = vunpack.c.l.b16 %v894
  %v942 = vunpack.c.h.b16 %v894
  %v943 = vpack.c.b16 %v913, %v911
  %v944 = vpack.c.b16 %v914, %v912
  %v945 = vpack.c.b16 %v917, %v915
  %v946 = vpack.c.b16 %v918, %v916
  %v947 = vpack.c.b16 %v921, %v919
  %v948 = vpack.c.b16 %v922, %v920
  %v949 = vpack.c.b16 %v925, %v923
  %v950 = vpack.c.b16 %v926, %v924
  %v951 = vpack.c.b16 %v929, %v927
  %v952 = vpack.c.b16 %v930, %v928
  %v953 = vpack.c.b16 %v933, %v931
  %v954 = vpack.c.b16 %v934, %v932
  %v955 = vpack.c.b16 %v937, %v935
  %v956 = vpack.c.b16 %v938, %v936
  %v957 = vpack.c.b16 %v941, %v939
  %v958 = vpack.c.b16 %v942, %v940
  %975 = vmatprep.subr.bf16.mxu0 %v944
  %976 = vmatpush1.bf16.msra.mxu0 %v943
  %977 = vmatprep.subr.bf16.mxu0 %v946
  %978 = vmatpush1.bf16.msra.mxu0 %v945
  %979 = vmatprep.subr.bf16.mxu0 %v948
  %980 = vmatpush1.bf16.msra.mxu0 %v947
  %981 = vmatprep.subr.bf16.mxu0 %v950
  %982 = vmatpush1.bf16.msra.mxu0 %v949
  %983 = vmatprep.subr.bf16.mxu0 %v952
  %984 = vmatpush1.bf16.msra.mxu0 %v951
  %985 = vmatprep.subr.bf16.mxu0 %v954
  %986 = vmatpush1.bf16.msra.mxu0 %v953
  %987 = vmatprep.subr.bf16.mxu0 %v956
  %988 = vmatpush1.bf16.msra.mxu0 %v955
  %989 = vmatprep.subr.bf16.mxu0 %v958
  %990 = vmatpush1.bf16.msra.mxu0 %v957
  %991 = vmatprep.subr.bf16.mxu0 0
  %992 = vmatpush1.bf16.msra.mxu0 0
  %993 = vmatprep.subr.bf16.mxu0 0
  %994 = vmatpush1.bf16.msra.mxu0 0
  %995 = vmatprep.subr.bf16.mxu0 0
  %996 = vmatpush1.bf16.msra.mxu0 0
  %997 = vmatprep.subr.bf16.mxu0 0
  %998 = vmatpush1.bf16.msra.mxu0 0
  %999 = vmatprep.subr.bf16.mxu0 0
  %1000 = vmatpush1.bf16.msra.mxu0 0
  %1001 = vmatprep.subr.bf16.mxu0 0
  %1002 = vmatpush1.bf16.msra.mxu0 0
  %1003 = vmatprep.subr.bf16.mxu0 0
  %1004 = vmatpush1.bf16.msra.mxu0 0
  %1005 = vmatprep.subr.bf16.mxu0 0
  %1006 = vmatpush1.bf16.msra.mxu0 0
  %1007 = vmatprep.mubr.bf16.mxu0 0
  %1008 = vmatmul.mubr.bf16.gmra.mrb[0].mxu0 %v863
  %v1009 = vpop.f32.mrb[0].mxu0
  %v1010 = vadd.f32 0.0, %v1009
  %v1011 = vpop.f32.mrb[0].mxu0
  %v1012 = vadd.f32 0.0, %v1011
  %v1013 = vpop.f32.mrb[0].mxu0
  %v1014 = vadd.f32 0.0, %v1013
  %v1015 = vpop.f32.mrb[0].mxu0
  %v1016 = vadd.f32 0.0, %v1015
  %1017 = vmatprep.mubr.bf16.mxu0 0
  %1018 = vmatmul.mubr.bf16.gmra.mrb[0].mxu0 %v864
  %v1019 = vpop.f32.mrb[0].mxu0
  %v1020 = vadd.f32 0.0, %v1019
  %v1021 = vpop.f32.mrb[0].mxu0
  %v1022 = vadd.f32 0.0, %v1021
  %v1023 = vpop.f32.mrb[0].mxu0
  %v1024 = vadd.f32 0.0, %v1023
  %v1025 = vpop.f32.mrb[0].mxu0
  %v1026 = vadd.f32 0.0, %v1025
  %1027 = vmatprep.mubr.bf16.mxu0 0
  %1028 = vmatmul.mubr.bf16.gmra.mrb[0].mxu0 %v865
  %v1029 = vpop.f32.mrb[0].mxu0
  %v1030 = vadd.f32 0.0, %v1029
  %v1031 = vpop.f32.mrb[0].mxu0
  %v1032 = vadd.f32 0.0, %v1031
  %v1033 = vpop.f32.mrb[0].mxu0
  %v1034 = vadd.f32 0.0, %v1033
  %v1035 = vpop.f32.mrb[0].mxu0
  %v1036 = vadd.f32 0.0, %v1035
  %1037 = vmatprep.mubr.bf16.mxu0 0
  %1038 = vmatmul.mubr.bf16.gmra.mrb[0].mxu0 %v866
  %v1039 = vpop.f32.mrb[0].mxu0
  %v1040 = vadd.f32 0.0, %v1039
  %v1041 = vpop.f32.mrb[0].mxu0
  %v1042 = vadd.f32 0.0, %v1041
  %v1043 = vpop.f32.mrb[0].mxu0
  %v1044 = vadd.f32 0.0, %v1043
  %v1045 = vpop.f32.mrb[0].mxu0
  %v1046 = vadd.f32 0.0, %v1045
  %1047 = vmatprep.mubr.bf16.mxu0 0
  %1048 = vmatmul.mubr.bf16.gmra.mrb[0].mxu0 %v867
  %v1049 = vpop.f32.mrb[0].mxu0
  %v1050 = vadd.f32 0.0, %v1049
  %v1051 = vpop.f32.mrb[0].mxu0
  %v1052 = vadd.f32 0.0, %v1051
  %v1053 = vpop.f32.mrb[0].mxu0
  %v1054 = vadd.f32 0.0, %v1053
  %v1055 = vpop.f32.mrb[0].mxu0
  %v1056 = vadd.f32 0.0, %v1055
  %1057 = vmatprep.mubr.bf16.mxu0 0
  %1058 = vmatmul.mubr.bf16.gmra.mrb[0].mxu0 %v868
  %v1059 = vpop.f32.mrb[0].mxu0
  %v1060 = vadd.f32 0.0, %v1059
  %v1061 = vpop.f32.mrb[0].mxu0
  %v1062 = vadd.f32 0.0, %v1061
  %v1063 = vpop.f32.mrb[0].mxu0
  %v1064 = vadd.f32 0.0, %v1063
  %v1065 = vpop.f32.mrb[0].mxu0
  %v1066 = vadd.f32 0.0, %v1065
  %1067 = vmatprep.mubr.bf16.mxu0 0
  %1068 = vmatmul.mubr.bf16.gmra.mrb[0].mxu0 %v869
  %v1069 = vpop.f32.mrb[0].mxu0
  %v1070 = vadd.f32 0.0, %v1069
  %v1071 = vpop.f32.mrb[0].mxu0
  %v1072 = vadd.f32 0.0, %v1071
  %v1073 = vpop.f32.mrb[0].mxu0
  %v1074 = vadd.f32 0.0, %v1073
  %v1075 = vpop.f32.mrb[0].mxu0
  %v1076 = vadd.f32 0.0, %v1075
  %1077 = vmatprep.mubr.bf16.mxu0 0
  %1078 = vmatmul.mubr.bf16.gmra.mrb[0].mxu0 %v870
  %v1079 = vpop.f32.mrb[0].mxu0
  %v1080 = vadd.f32 0.0, %v1079
  %v1081 = vpop.f32.mrb[0].mxu0
  %v1082 = vadd.f32 0.0, %v1081
  %v1083 = vpop.f32.mrb[0].mxu0
  %v1084 = vadd.f32 0.0, %v1083
  %v1085 = vpop.f32.mrb[0].mxu0
  %v1086 = vadd.f32 0.0, %v1085
  %1087 = vmatprep.mubr.bf16.mxu0 0
  %1088 = vmatmul.mubr.bf16.gmra.mrb[0].mxu0 %v871
  %v1089 = vpop.f32.mrb[0].mxu0
  %v1090 = vadd.f32 0.0, %v1089
  %v1091 = vpop.f32.mrb[0].mxu0
  %v1092 = vadd.f32 0.0, %v1091
  %v1093 = vpop.f32.mrb[0].mxu0
  %v1094 = vadd.f32 0.0, %v1093
  %v1095 = vpop.f32.mrb[0].mxu0
  %v1096 = vadd.f32 0.0, %v1095
  %1097 = vmatprep.mubr.bf16.mxu0 0
  %1098 = vmatmul.mubr.bf16.gmra.mrb[0].mxu0 %v872
  %v1099 = vpop.f32.mrb[0].mxu0
  %v1100 = vadd.f32 0.0, %v1099
  %v1101 = vpop.f32.mrb[0].mxu0
  %v1102 = vadd.f32 0.0, %v1101
  %v1103 = vpop.f32.mrb[0].mxu0
  %v1104 = vadd.f32 0.0, %v1103
  %v1105 = vpop.f32.mrb[0].mxu0
  %v1106 = vadd.f32 0.0, %v1105
  %1107 = vmatprep.mubr.bf16.mxu0 0
  %1108 = vmatmul.mubr.bf16.gmra.mrb[0].mxu0 %v873
  %v1109 = vpop.f32.mrb[0].mxu0
  %v1110 = vadd.f32 0.0, %v1109
  %v1111 = vpop.f32.mrb[0].mxu0
  %v1112 = vadd.f32 0.0, %v1111
  %v1113 = vpop.f32.mrb[0].mxu0
  %v1114 = vadd.f32 0.0, %v1113
  %v1115 = vpop.f32.mrb[0].mxu0
  %v1116 = vadd.f32 0.0, %v1115
  %1117 = vmatprep.mubr.bf16.mxu0 0
  %1118 = vmatmul.mubr.bf16.gmra.mrb[0].mxu0 %v874
  %v1119 = vpop.f32.mrb[0].mxu0
  %v1120 = vadd.f32 0.0, %v1119
  %v1121 = vpop.f32.mrb[0].mxu0
  %v1122 = vadd.f32 0.0, %v1121
  %v1123 = vpop.f32.mrb[0].mxu0
  %v1124 = vadd.f32 0.0, %v1123
  %v1125 = vpop.f32.mrb[0].mxu0
  %v1126 = vadd.f32 0.0, %v1125
  %1127 = vmatprep.mubr.bf16.mxu0 0
  %1128 = vmatmul.mubr.bf16.gmra.mrb[0].mxu0 %v875
  %v1129 = vpop.f32.mrb[0].mxu0
  %v1130 = vadd.f32 0.0, %v1129
  %v1131 = vpop.f32.mrb[0].mxu0
  %v1132 = vadd.f32 0.0, %v1131
  %v1133 = vpop.f32.mrb[0].mxu0
  %v1134 = vadd.f32 0.0, %v1133
  %v1135 = vpop.f32.mrb[0].mxu0
  %v1136 = vadd.f32 0.0, %v1135
  %1137 = vmatprep.mubr.bf16.mxu0 0
  %1138 = vmatmul.mubr.bf16.gmra.mrb[0].mxu0 %v876
  %v1139 = vpop.f32.mrb[0].mxu0
  %v1140 = vadd.f32 0.0, %v1139
  %v1141 = vpop.f32.mrb[0].mxu0
  %v1142 = vadd.f32 0.0, %v1141
  %v1143 = vpop.f32.mrb[0].mxu0
  %v1144 = vadd.f32 0.0, %v1143
  %v1145 = vpop.f32.mrb[0].mxu0
  %v1146 = vadd.f32 0.0, %v1145
  %1147 = vmatprep.mubr.bf16.mxu0 0
  %1148 = vmatmul.mubr.bf16.gmra.mrb[0].mxu0 %v877
  %v1149 = vpop.f32.mrb[0].mxu0
  %v1150 = vadd.f32 0.0, %v1149
  %v1151 = vpop.f32.mrb[0].mxu0
  %v1152 = vadd.f32 0.0, %v1151
  %v1153 = vpop.f32.mrb[0].mxu0
  %v1154 = vadd.f32 0.0, %v1153
  %v1155 = vpop.f32.mrb[0].mxu0
  %v1156 = vadd.f32 0.0, %v1155
  %1157 = vmatprep.mubr.bf16.mxu0 0
  %1158 = vmatmul.mubr.bf16.gmra.mrb[0].mxu0 %v878
  %v1159 = vpop.f32.mrb[0].mxu0
  %v1160 = vadd.f32 0.0, %v1159
  %v1161 = vpop.f32.mrb[0].mxu0
  %v1162 = vadd.f32 0.0, %v1161
  %v1163 = vpop.f32.mrb[0].mxu0
  %v1164 = vadd.f32 0.0, %v1163
  %v1165 = vpop.f32.mrb[0].mxu0
  %v1166 = vadd.f32 0.0, %v1165
  %1167 = vdwg.mxu0
  %v1168 = vpack.c.bf16 %v1014, %v1010
  %v1169 = vpack.c.bf16 %v1016, %v1012
  %v1170 = vpack.c.bf16 %v1024, %v1020
  %v1171 = vpack.c.bf16 %v1026, %v1022
  %v1172 = vpack.c.bf16 %v1034, %v1030
  %v1173 = vpack.c.bf16 %v1036, %v1032
  %v1174 = vpack.c.bf16 %v1044, %v1040
  %v1175 = vpack.c.bf16 %v1046, %v1042
  %v1176 = vpack.c.bf16 %v1054, %v1050
  %v1177 = vpack.c.bf16 %v1056, %v1052
  %v1178 = vpack.c.bf16 %v1064, %v1060
  %v1179 = vpack.c.bf16 %v1066, %v1062
  %v1180 = vpack.c.bf16 %v1074, %v1070
  %v1181 = vpack.c.bf16 %v1076, %v1072
  %v1182 = vpack.c.bf16 %v1084, %v1080
  %v1183 = vpack.c.bf16 %v1086, %v1082
  %v1184 = vpack.c.bf16 %v1094, %v1090
  %v1185 = vpack.c.bf16 %v1096, %v1092
  %v1186 = vpack.c.bf16 %v1104, %v1100
  %v1187 = vpack.c.bf16 %v1106, %v1102
  %v1188 = vpack.c.bf16 %v1114, %v1110
  %v1189 = vpack.c.bf16 %v1116, %v1112
  %v1190 = vpack.c.bf16 %v1124, %v1120
  %v1191 = vpack.c.bf16 %v1126, %v1122
  %v1192 = vpack.c.bf16 %v1134, %v1130
  %v1193 = vpack.c.bf16 %v1136, %v1132
  %v1194 = vpack.c.bf16 %v1144, %v1140
  %v1195 = vpack.c.bf16 %v1146, %v1142
  %v1196 = vpack.c.bf16 %v1154, %v1150
  %v1197 = vpack.c.bf16 %v1156, %v1152
  %v1198 = vpack.c.bf16 %v1164, %v1160
  %v1199 = vpack.c.bf16 %v1166, %v1162
  %v1200 = vld [vmem:[%s6] sm:$0x3]
  %v1202 = vlaneseq
  %v1203 = vshrl.u32 %v1202, 7
  %v1204 = vsub.s32 0, %v1203
  %v1205 = vrot.slane %v1200, %v1204
  %v1206 = vlaneseq
  %v1207 = vshrl.u32 %v1206, 7
  %v1208 = vsub.s32 1, %v1207
  %v1209 = vrot.slane %v1200, %v1208
  %v1212 = vpack.c.bf16 %v1205, %v1205
  %v1213 = vpack.c.bf16 %v1209, %v1209
  %v1215 = vpack.i.b16 %v1212, %v1212
  %v1217 = vlaneseq
  %v1218 = vshrl.u32 %v1217, 7
  %v1219 = vsub.s32 0, %v1218
  %v1220 = vrot.slane %v1215, %v1219
  %v1222 = vpack.i.b16 %v1213, %v1213
  %v1224 = vlaneseq
  %v1225 = vshrl.u32 %v1224, 7
  %v1226 = vsub.s32 0, %v1225
  %v1227 = vrot.slane %v1222, %v1226
  %v1228 = vadd.bf16 %v1168, %v1220
  %v1229 = vadd.bf16 %v1169, %v1227
  %v1230 = vadd.bf16 %v1170, %v1220
  %v1231 = vadd.bf16 %v1171, %v1227
  %v1232 = vadd.bf16 %v1172, %v1220
  %v1233 = vadd.bf16 %v1173, %v1227
  %v1234 = vadd.bf16 %v1174, %v1220
  %v1235 = vadd.bf16 %v1175, %v1227
  %v1236 = vadd.bf16 %v1176, %v1220
  %v1237 = vadd.bf16 %v1177, %v1227
  %v1238 = vadd.bf16 %v1178, %v1220
  %v1239 = vadd.bf16 %v1179, %v1227
  %v1240 = vadd.bf16 %v1180, %v1220
  %v1241 = vadd.bf16 %v1181, %v1227
  %v1242 = vadd.bf16 %v1182, %v1220
  %v1243 = vadd.bf16 %v1183, %v1227
  %v1244 = vadd.bf16 %v1184, %v1220
  %v1245 = vadd.bf16 %v1185, %v1227
  %v1246 = vadd.bf16 %v1186, %v1220
  %v1247 = vadd.bf16 %v1187, %v1227
  %v1248 = vadd.bf16 %v1188, %v1220
  %v1249 = vadd.bf16 %v1189, %v1227
  %v1250 = vadd.bf16 %v1190, %v1220
  %v1251 = vadd.bf16 %v1191, %v1227
  %v1252 = vadd.bf16 %v1192, %v1220
  %v1253 = vadd.bf16 %v1193, %v1227
  %v1254 = vadd.bf16 %v1194, %v1220
  %v1255 = vadd.bf16 %v1195, %v1227
  %v1256 = vadd.bf16 %v1196, %v1220
  %v1257 = vadd.bf16 %v1197, %v1227
  %v1258 = vadd.bf16 %v1198, %v1220
  %v1259 = vadd.bf16 %v1199, %v1227
  %v1260 = vmul.bf16 %v1228, %v1228
  %v1261 = vmul.bf16 %v1229, %v1229
  %v1262 = vmul.bf16 %v1230, %v1230
  %v1263 = vmul.bf16 %v1231, %v1231
  %v1264 = vmul.bf16 %v1232, %v1232
  %v1265 = vmul.bf16 %v1233, %v1233
  %v1266 = vmul.bf16 %v1234, %v1234
  %v1267 = vmul.bf16 %v1235, %v1235
  %v1268 = vmul.bf16 %v1236, %v1236
  %v1269 = vmul.bf16 %v1237, %v1237
  %v1270 = vmul.bf16 %v1238, %v1238
  %v1271 = vmul.bf16 %v1239, %v1239
  %v1272 = vmul.bf16 %v1240, %v1240
  %v1273 = vmul.bf16 %v1241, %v1241
  %v1274 = vmul.bf16 %v1242, %v1242
  %v1275 = vmul.bf16 %v1243, %v1243
  %v1276 = vmul.bf16 %v1244, %v1244
  %v1277 = vmul.bf16 %v1245, %v1245
  %v1278 = vmul.bf16 %v1246, %v1246
  %v1279 = vmul.bf16 %v1247, %v1247
  %v1280 = vmul.bf16 %v1248, %v1248
  %v1281 = vmul.bf16 %v1249, %v1249
  %v1282 = vmul.bf16 %v1250, %v1250
  %v1283 = vmul.bf16 %v1251, %v1251
  %v1284 = vmul.bf16 %v1252, %v1252
  %v1285 = vmul.bf16 %v1253, %v1253
  %v1286 = vmul.bf16 %v1254, %v1254
  %v1287 = vmul.bf16 %v1255, %v1255
  %v1288 = vmul.bf16 %v1256, %v1256
  %v1289 = vmul.bf16 %v1257, %v1257
  %v1290 = vmul.bf16 %v1258, %v1258
  %v1291 = vmul.bf16 %v1259, %v1259
  %v1292 = vmul.bf16 %v1228, %v1260
  %v1293 = vmul.bf16 %v1229, %v1261
  %v1294 = vmul.bf16 %v1230, %v1262
  %v1295 = vmul.bf16 %v1231, %v1263
  %v1296 = vmul.bf16 %v1232, %v1264
  %v1297 = vmul.bf16 %v1233, %v1265
  %v1298 = vmul.bf16 %v1234, %v1266
  %v1299 = vmul.bf16 %v1235, %v1267
  %v1300 = vmul.bf16 %v1236, %v1268
  %v1301 = vmul.bf16 %v1237, %v1269
  %v1302 = vmul.bf16 %v1238, %v1270
  %v1303 = vmul.bf16 %v1239, %v1271
  %v1304 = vmul.bf16 %v1240, %v1272
  %v1305 = vmul.bf16 %v1241, %v1273
  %v1306 = vmul.bf16 %v1242, %v1274
  %v1307 = vmul.bf16 %v1243, %v1275
  %v1308 = vmul.bf16 %v1244, %v1276
  %v1309 = vmul.bf16 %v1245, %v1277
  %v1310 = vmul.bf16 %v1246, %v1278
  %v1311 = vmul.bf16 %v1247, %v1279
  %v1312 = vmul.bf16 %v1248, %v1280
  %v1313 = vmul.bf16 %v1249, %v1281
  %v1314 = vmul.bf16 %v1250, %v1282
  %v1315 = vmul.bf16 %v1251, %v1283
  %v1316 = vmul.bf16 %v1252, %v1284
  %v1317 = vmul.bf16 %v1253, %v1285
  %v1318 = vmul.bf16 %v1254, %v1286
  %v1319 = vmul.bf16 %v1255, %v1287
  %v1320 = vmul.bf16 %v1256, %v1288
  %v1321 = vmul.bf16 %v1257, %v1289
  %v1322 = vmul.bf16 %v1258, %v1290
  %v1323 = vmul.bf16 %v1259, %v1291
  %v1324 = vmul.bf16 %v1292, 1027030327
  %v1325 = vmul.bf16 %v1293, 1027030327
  %v1326 = vmul.bf16 %v1294, 1027030327
  %v1327 = vmul.bf16 %v1295, 1027030327
  %v1328 = vmul.bf16 %v1296, 1027030327
  %v1329 = vmul.bf16 %v1297, 1027030327
  %v1330 = vmul.bf16 %v1298, 1027030327
  %v1331 = vmul.bf16 %v1299, 1027030327
  %v1332 = vmul.bf16 %v1300, 1027030327
  %v1333 = vmul.bf16 %v1301, 1027030327
  %v1334 = vmul.bf16 %v1302, 1027030327
  %v1335 = vmul.bf16 %v1303, 1027030327
  %v1336 = vmul.bf16 %v1304, 1027030327
  %v1337 = vmul.bf16 %v1305, 1027030327
  %v1338 = vmul.bf16 %v1306, 1027030327
  %v1339 = vmul.bf16 %v1307, 1027030327
  %v1340 = vmul.bf16 %v1308, 1027030327
  %v1341 = vmul.bf16 %v1309, 1027030327
  %v1342 = vmul.bf16 %v1310, 1027030327
  %v1343 = vmul.bf16 %v1311, 1027030327
  %v1344 = vmul.bf16 %v1312, 1027030327
  %v1345 = vmul.bf16 %v1313, 1027030327
  %v1346 = vmul.bf16 %v1314, 1027030327
  %v1347 = vmul.bf16 %v1315, 1027030327
  %v1348 = vmul.bf16 %v1316, 1027030327
  %v1349 = vmul.bf16 %v1317, 1027030327
  %v1350 = vmul.bf16 %v1318, 1027030327
  %v1351 = vmul.bf16 %v1319, 1027030327
  %v1352 = vmul.bf16 %v1320, 1027030327
  %v1353 = vmul.bf16 %v1321, 1027030327
  %v1354 = vmul.bf16 %v1322, 1027030327
  %v1355 = vmul.bf16 %v1323, 1027030327
  %v1356 = vadd.bf16 %v1228, %v1324
  %v1357 = vadd.bf16 %v1229, %v1325
  %v1358 = vadd.bf16 %v1230, %v1326
  %v1359 = vadd.bf16 %v1231, %v1327
  %v1360 = vadd.bf16 %v1232, %v1328
  %v1361 = vadd.bf16 %v1233, %v1329
  %v1362 = vadd.bf16 %v1234, %v1330
  %v1363 = vadd.bf16 %v1235, %v1331
  %v1364 = vadd.bf16 %v1236, %v1332
  %v1365 = vadd.bf16 %v1237, %v1333
  %v1366 = vadd.bf16 %v1238, %v1334
  %v1367 = vadd.bf16 %v1239, %v1335
  %v1368 = vadd.bf16 %v1240, %v1336
  %v1369 = vadd.bf16 %v1241, %v1337
  %v1370 = vadd.bf16 %v1242, %v1338
  %v1371 = vadd.bf16 %v1243, %v1339
  %v1372 = vadd.bf16 %v1244, %v1340
  %v1373 = vadd.bf16 %v1245, %v1341
  %v1374 = vadd.bf16 %v1246, %v1342
  %v1375 = vadd.bf16 %v1247, %v1343
  %v1376 = vadd.bf16 %v1248, %v1344
  %v1377 = vadd.bf16 %v1249, %v1345
  %v1378 = vadd.bf16 %v1250, %v1346
  %v1379 = vadd.bf16 %v1251, %v1347
  %v1380 = vadd.bf16 %v1252, %v1348
  %v1381 = vadd.bf16 %v1253, %v1349
  %v1382 = vadd.bf16 %v1254, %v1350
  %v1383 = vadd.bf16 %v1255, %v1351
  %v1384 = vadd.bf16 %v1256, %v1352
  %v1385 = vadd.bf16 %v1257, %v1353
  %v1386 = vadd.bf16 %v1258, %v1354
  %v1387 = vadd.bf16 %v1259, %v1355
  %v1388 = vmul.bf16 %v1356, 1061961548
  %v1389 = vmul.bf16 %v1357, 1061961548
  %v1390 = vmul.bf16 %v1358, 1061961548
  %v1391 = vmul.bf16 %v1359, 1061961548
  %v1392 = vmul.bf16 %v1360, 1061961548
  %v1393 = vmul.bf16 %v1361, 1061961548
  %v1394 = vmul.bf16 %v1362, 1061961548
  %v1395 = vmul.bf16 %v1363, 1061961548
  %v1396 = vmul.bf16 %v1364, 1061961548
  %v1397 = vmul.bf16 %v1365, 1061961548
  %v1398 = vmul.bf16 %v1366, 1061961548
  %v1399 = vmul.bf16 %v1367, 1061961548
  %v1400 = vmul.bf16 %v1368, 1061961548
  %v1401 = vmul.bf16 %v1369, 1061961548
  %v1402 = vmul.bf16 %v1370, 1061961548
  %v1403 = vmul.bf16 %v1371, 1061961548
  %v1404 = vmul.bf16 %v1372, 1061961548
  %v1405 = vmul.bf16 %v1373, 1061961548
  %v1406 = vmul.bf16 %v1374, 1061961548
  %v1407 = vmul.bf16 %v1375, 1061961548
  %v1408 = vmul.bf16 %v1376, 1061961548
  %v1409 = vmul.bf16 %v1377, 1061961548
  %v1410 = vmul.bf16 %v1378, 1061961548
  %v1411 = vmul.bf16 %v1379, 1061961548
  %v1412 = vmul.bf16 %v1380, 1061961548
  %v1413 = vmul.bf16 %v1381, 1061961548
  %v1414 = vmul.bf16 %v1382, 1061961548
  %v1415 = vmul.bf16 %v1383, 1061961548
  %v1416 = vmul.bf16 %v1384, 1061961548
  %v1417 = vmul.bf16 %v1385, 1061961548
  %v1418 = vmul.bf16 %v1386, 1061961548
  %v1419 = vmul.bf16 %v1387, 1061961548
  %v1420 = vtanh.bf16.pop %v1388
  %v1421 = vtanh.bf16.pop %v1389
  %v1422 = vtanh.bf16.pop %v1390
  %v1423 = vtanh.bf16.pop %v1391
  %v1424 = vtanh.bf16.pop %v1392
  %v1425 = vtanh.bf16.pop %v1393
  %v1426 = vtanh.bf16.pop %v1394
  %v1427 = vtanh.bf16.pop %v1395
  %v1428 = vtanh.bf16.pop %v1396
  %v1429 = vtanh.bf16.pop %v1397
  %v1430 = vtanh.bf16.pop %v1398
  %v1431 = vtanh.bf16.pop %v1399
  %v1432 = vtanh.bf16.pop %v1400
  %v1433 = vtanh.bf16.pop %v1401
  %v1434 = vtanh.bf16.pop %v1402
  %v1435 = vtanh.bf16.pop %v1403
  %v1436 = vtanh.bf16.pop %v1404
  %v1437 = vtanh.bf16.pop %v1405
  %v1438 = vtanh.bf16.pop %v1406
  %v1439 = vtanh.bf16.pop %v1407
  %v1440 = vtanh.bf16.pop %v1408
  %v1441 = vtanh.bf16.pop %v1409
  %v1442 = vtanh.bf16.pop %v1410
  %v1443 = vtanh.bf16.pop %v1411
  %v1444 = vtanh.bf16.pop %v1412
  %v1445 = vtanh.bf16.pop %v1413
  %v1446 = vtanh.bf16.pop %v1414
  %v1447 = vtanh.bf16.pop %v1415
  %v1448 = vtanh.bf16.pop %v1416
  %v1449 = vtanh.bf16.pop %v1417
  %v1450 = vtanh.bf16.pop %v1418
  %v1451 = vtanh.bf16.pop %v1419
  %v1452 = vadd.bf16 %v1420, 1065369472
  %v1453 = vadd.bf16 %v1421, 1065369472
  %v1454 = vadd.bf16 %v1422, 1065369472
  %v1455 = vadd.bf16 %v1423, 1065369472
  %v1456 = vadd.bf16 %v1424, 1065369472
  %v1457 = vadd.bf16 %v1425, 1065369472
  %v1458 = vadd.bf16 %v1426, 1065369472
  %v1459 = vadd.bf16 %v1427, 1065369472
  %v1460 = vadd.bf16 %v1428, 1065369472
  %v1461 = vadd.bf16 %v1429, 1065369472
  %v1462 = vadd.bf16 %v1430, 1065369472
  %v1463 = vadd.bf16 %v1431, 1065369472
  %v1464 = vadd.bf16 %v1432, 1065369472
  %v1465 = vadd.bf16 %v1433, 1065369472
  %v1466 = vadd.bf16 %v1434, 1065369472
  %v1467 = vadd.bf16 %v1435, 1065369472
  %v1468 = vadd.bf16 %v1436, 1065369472
  %v1469 = vadd.bf16 %v1437, 1065369472
  %v1470 = vadd.bf16 %v1438, 1065369472
  %v1471 = vadd.bf16 %v1439, 1065369472
  %v1472 = vadd.bf16 %v1440, 1065369472
  %v1473 = vadd.bf16 %v1441, 1065369472
  %v1474 = vadd.bf16 %v1442, 1065369472
  %v1475 = vadd.bf16 %v1443, 1065369472
  %v1476 = vadd.bf16 %v1444, 1065369472
  %v1477 = vadd.bf16 %v1445, 1065369472
  %v1478 = vadd.bf16 %v1446, 1065369472
  %v1479 = vadd.bf16 %v1447, 1065369472
  %v1480 = vadd.bf16 %v1448, 1065369472
  %v1481 = vadd.bf16 %v1449, 1065369472
  %v1482 = vadd.bf16 %v1450, 1065369472
  %v1483 = vadd.bf16 %v1451, 1065369472
  %v1484 = vmul.bf16 %v1452, 1056980736
  %v1485 = vmul.bf16 %v1453, 1056980736
  %v1486 = vmul.bf16 %v1454, 1056980736
  %v1487 = vmul.bf16 %v1455, 1056980736
  %v1488 = vmul.bf16 %v1456, 1056980736
  %v1489 = vmul.bf16 %v1457, 1056980736
  %v1490 = vmul.bf16 %v1458, 1056980736
  %v1491 = vmul.bf16 %v1459, 1056980736
  %v1492 = vmul.bf16 %v1460, 1056980736
  %v1493 = vmul.bf16 %v1461, 1056980736
  %v1494 = vmul.bf16 %v1462, 1056980736
  %v1495 = vmul.bf16 %v1463, 1056980736
  %v1496 = vmul.bf16 %v1464, 1056980736
  %v1497 = vmul.bf16 %v1465, 1056980736
  %v1498 = vmul.bf16 %v1466, 1056980736
  %v1499 = vmul.bf16 %v1467, 1056980736
  %v1500 = vmul.bf16 %v1468, 1056980736
  %v1501 = vmul.bf16 %v1469, 1056980736
  %v1502 = vmul.bf16 %v1470, 1056980736
  %v1503 = vmul.bf16 %v1471, 1056980736
  %v1504 = vmul.bf16 %v1472, 1056980736
  %v1505 = vmul.bf16 %v1473, 1056980736
  %v1506 = vmul.bf16 %v1474, 1056980736
  %v1507 = vmul.bf16 %v1475, 1056980736
  %v1508 = vmul.bf16 %v1476, 1056980736
  %v1509 = vmul.bf16 %v1477, 1056980736
  %v1510 = vmul.bf16 %v1478, 1056980736
  %v1511 = vmul.bf16 %v1479, 1056980736
  %v1512 = vmul.bf16 %v1480, 1056980736
  %v1513 = vmul.bf16 %v1481, 1056980736
  %v1514 = vmul.bf16 %v1482, 1056980736
  %v1515 = vmul.bf16 %v1483, 1056980736
  %v1516 = vmul.bf16 %v1228, %v1484
  %v1517 = vmul.bf16 %v1229, %v1485
  %v1518 = vmul.bf16 %v1230, %v1486
  %v1519 = vmul.bf16 %v1231, %v1487
  %v1520 = vmul.bf16 %v1232, %v1488
  %v1521 = vmul.bf16 %v1233, %v1489
  %v1522 = vmul.bf16 %v1234, %v1490
  %v1523 = vmul.bf16 %v1235, %v1491
  %v1524 = vmul.bf16 %v1236, %v1492
  %v1525 = vmul.bf16 %v1237, %v1493
  %v1526 = vmul.bf16 %v1238, %v1494
  %v1527 = vmul.bf16 %v1239, %v1495
  %v1528 = vmul.bf16 %v1240, %v1496
  %v1529 = vmul.bf16 %v1241, %v1497
  %v1530 = vmul.bf16 %v1242, %v1498
  %v1531 = vmul.bf16 %v1243, %v1499
  %v1532 = vmul.bf16 %v1244, %v1500
  %v1533 = vmul.bf16 %v1245, %v1501
  %v1534 = vmul.bf16 %v1246, %v1502
  %v1535 = vmul.bf16 %v1247, %v1503
  %v1536 = vmul.bf16 %v1248, %v1504
  %v1537 = vmul.bf16 %v1249, %v1505
  %v1538 = vmul.bf16 %v1250, %v1506
  %v1539 = vmul.bf16 %v1251, %v1507
  %v1540 = vmul.bf16 %v1252, %v1508
  %v1541 = vmul.bf16 %v1253, %v1509
  %v1542 = vmul.bf16 %v1254, %v1510
  %v1543 = vmul.bf16 %v1255, %v1511
  %v1544 = vmul.bf16 %v1256, %v1512
  %v1545 = vmul.bf16 %v1257, %v1513
  %v1546 = vmul.bf16 %v1258, %v1514
  %v1547 = vmul.bf16 %v1259, %v1515
  %v1548 = vld [vmem:[%s7] sm:$0xf]
  %v1549 = vld [vmem:[%s7 + $0x4] sm:$0xf]
  %v1550 = vld [vmem:[%s7 + $0x8] sm:$0xf]
  %v1551 = vld [vmem:[%s7 + $0xc] sm:$0xf]
  %v1552 = vld [vmem:[%s7 + $0x10] sm:$0xf]
  %v1553 = vld [vmem:[%s7 + $0x14] sm:$0xf]
  %v1554 = vld [vmem:[%s7 + $0x18] sm:$0xf]
  %v1555 = vld [vmem:[%s7 + $0x1c] sm:$0xf]
  %v1556 = vld [vmem:[%s7 + $0x20] sm:$0xf]
  %v1557 = vld [vmem:[%s7 + $0x24] sm:$0xf]
  %v1558 = vld [vmem:[%s7 + $0x28] sm:$0xf]
  %v1559 = vld [vmem:[%s7 + $0x2c] sm:$0xf]
  %v1560 = vld [vmem:[%s7 + $0x30] sm:$0xf]
  %v1561 = vld [vmem:[%s7 + $0x34] sm:$0xf]
  %v1562 = vld [vmem:[%s7 + $0x38] sm:$0xf]
  %v1563 = vld [vmem:[%s7 + $0x3c] sm:$0xf]
  %v1564 = vld [vmem:[%s7 + $0x40] sm:$0xf]
  %v1565 = vld [vmem:[%s7 + $0x44] sm:$0xf]
  %v1566 = vld [vmem:[%s7 + $0x48] sm:$0xf]
  %v1567 = vld [vmem:[%s7 + $0x4c] sm:$0xf]
  %v1568 = vld [vmem:[%s7 + $0x50] sm:$0xf]
  %v1569 = vld [vmem:[%s7 + $0x54] sm:$0xf]
  %v1570 = vld [vmem:[%s7 + $0x58] sm:$0xf]
  %v1571 = vld [vmem:[%s7 + $0x5c] sm:$0xf]
  %v1572 = vld [vmem:[%s7 + $0x60] sm:$0xf]
  %v1573 = vld [vmem:[%s7 + $0x64] sm:$0xf]
  %v1574 = vld [vmem:[%s7 + $0x68] sm:$0xf]
  %v1575 = vld [vmem:[%s7 + $0x6c] sm:$0xf]
  %v1576 = vld [vmem:[%s7 + $0x70] sm:$0xf]
  %v1577 = vld [vmem:[%s7 + $0x74] sm:$0xf]
  %v1578 = vld [vmem:[%s7 + $0x78] sm:$0xf]
  %v1579 = vld [vmem:[%s7 + $0x7c] sm:$0xf]
  %v1612 = vunpack.c.l.b16 %v1548
  %v1613 = vunpack.c.l.b16 %v1549
  %v1614 = vunpack.c.l.b16 %v1550
  %v1615 = vunpack.c.l.b16 %v1551
  %v1616 = vunpack.c.l.b16 %v1552
  %v1617 = vunpack.c.l.b16 %v1553
  %v1618 = vunpack.c.l.b16 %v1554
  %v1619 = vunpack.c.l.b16 %v1555
  %v1620 = vunpack.c.l.b16 %v1556
  %v1621 = vunpack.c.l.b16 %v1557
  %v1622 = vunpack.c.l.b16 %v1558
  %v1623 = vunpack.c.l.b16 %v1559
  %v1624 = vunpack.c.l.b16 %v1560
  %v1625 = vunpack.c.l.b16 %v1561
  %v1626 = vunpack.c.l.b16 %v1562
  %v1627 = vunpack.c.l.b16 %v1563
  %v1628 = vunpack.c.l.b16 %v1564
  %v1629 = vunpack.c.l.b16 %v1565
  %v1630 = vunpack.c.l.b16 %v1566
  %v1631 = vunpack.c.l.b16 %v1567
  %v1632 = vunpack.c.l.b16 %v1568
  %v1633 = vunpack.c.l.b16 %v1569
  %v1634 = vunpack.c.l.b16 %v1570
  %v1635 = vunpack.c.l.b16 %v1571
  %v1636 = vunpack.c.l.b16 %v1572
  %v1637 = vunpack.c.l.b16 %v1573
  %v1638 = vunpack.c.l.b16 %v1574
  %v1639 = vunpack.c.l.b16 %v1575
  %v1640 = vunpack.c.l.b16 %v1576
  %v1641 = vunpack.c.l.b16 %v1577
  %v1642 = vunpack.c.l.b16 %v1578
  %v1643 = vunpack.c.l.b16 %v1579
  %v1644 = vpack.c.b16 %v1613, %v1612
  %v1645 = vpack.c.b16 %v1615, %v1614
  %v1646 = vpack.c.b16 %v1617, %v1616
  %v1647 = vpack.c.b16 %v1619, %v1618
  %v1648 = vpack.c.b16 %v1621, %v1620
  %v1649 = vpack.c.b16 %v1623, %v1622
  %v1650 = vpack.c.b16 %v1625, %v1624
  %v1651 = vpack.c.b16 %v1627, %v1626
  %v1652 = vpack.c.b16 %v1629, %v1628
  %v1653 = vpack.c.b16 %v1631, %v1630
  %v1654 = vpack.c.b16 %v1633, %v1632
  %v1655 = vpack.c.b16 %v1635, %v1634
  %v1656 = vpack.c.b16 %v1637, %v1636
  %v1657 = vpack.c.b16 %v1639, %v1638
  %v1658 = vpack.c.b16 %v1641, %v1640
  %v1659 = vpack.c.b16 %v1643, %v1642
  %1676 = vmatprep.subr.bf16.mxu0 0
  %1677 = vmatpush1.bf16.msra.mxu0 %v1644
  %1678 = vmatprep.subr.bf16.mxu0 0
  %1679 = vmatpush1.bf16.msra.mxu0 %v1645
  %1680 = vmatprep.subr.bf16.mxu0 0
  %1681 = vmatpush1.bf16.msra.mxu0 %v1646
  %1682 = vmatprep.subr.bf16.mxu0 0
  %1683 = vmatpush1.bf16.msra.mxu0 %v1647
  %1684 = vmatprep.subr.bf16.mxu0 0
  %1685 = vmatpush1.bf16.msra.mxu0 %v1648
  %1686 = vmatprep.subr.bf16.mxu0 0
  %1687 = vmatpush1.bf16.msra.mxu0 %v1649
  %1688 = vmatprep.subr.bf16.mxu0 0
  %1689 = vmatpush1.bf16.msra.mxu0 %v1650
  %1690 = vmatprep.subr.bf16.mxu0 0
  %1691 = vmatpush1.bf16.msra.mxu0 %v1651
  %1692 = vmatprep.subr.bf16.mxu0 0
  %1693 = vmatpush1.bf16.msra.mxu0 %v1652
  %1694 = vmatprep.subr.bf16.mxu0 0
  %1695 = vmatpush1.bf16.msra.mxu0 %v1653
  %1696 = vmatprep.subr.bf16.mxu0 0
  %1697 = vmatpush1.bf16.msra.mxu0 %v1654
  %1698 = vmatprep.subr.bf16.mxu0 0
  %1699 = vmatpush1.bf16.msra.mxu0 %v1655
  %1700 = vmatprep.subr.bf16.mxu0 0
  %1701 = vmatpush1.bf16.msra.mxu0 %v1656
  %1702 = vmatprep.subr.bf16.mxu0 0
  %1703 = vmatpush1.bf16.msra.mxu0 %v1657
  %1704 = vmatprep.subr.bf16.mxu0 0
  %1705 = vmatpush1.bf16.msra.mxu0 %v1658
  %1706 = vmatprep.subr.bf16.mxu0 0
  %1707 = vmatpush1.bf16.msra.mxu0 %v1659
  %1708 = vmatprep.mubr.bf16.mxu0 %v1517
  %1709 = vmatmul.mubr.bf16.gmra.mrb[0].mxu0 %v1516
  %v1710 = vpop.f32.mrb[0].mxu0
  %v1711 = vadd.f32 0.0, %v1710
  %v1712 = vpop.f32.mrb[0].mxu0
  %v1713 = vpop.f32.mrb[0].mxu0
  %v1714 = vadd.f32 0.0, %v1713
  %v1715 = vpop.f32.mrb[0].mxu0
  %1716 = vmatprep.mubr.bf16.mxu0 %v1519
  %1717 = vmatmul.mubr.bf16.gmra.mrb[0].mxu0 %v1518
  %v1718 = vpop.f32.mrb[0].mxu0
  %v1719 = vadd.f32 0.0, %v1718
  %v1720 = vpop.f32.mrb[0].mxu0
  %v1721 = vpop.f32.mrb[0].mxu0
  %v1722 = vadd.f32 0.0, %v1721
  %v1723 = vpop.f32.mrb[0].mxu0
  %1724 = vmatprep.mubr.bf16.mxu0 %v1521
  %1725 = vmatmul.mubr.bf16.gmra.mrb[0].mxu0 %v1520
  %v1726 = vpop.f32.mrb[0].mxu0
  %v1727 = vadd.f32 0.0, %v1726
  %v1728 = vpop.f32.mrb[0].mxu0
  %v1729 = vpop.f32.mrb[0].mxu0
  %v1730 = vadd.f32 0.0, %v1729
  %v1731 = vpop.f32.mrb[0].mxu0
  %1732 = vmatprep.mubr.bf16.mxu0 %v1523
  %1733 = vmatmul.mubr.bf16.gmra.mrb[0].mxu0 %v1522
  %v1734 = vpop.f32.mrb[0].mxu0
  %v1735 = vadd.f32 0.0, %v1734
  %v1736 = vpop.f32.mrb[0].mxu0
  %v1737 = vpop.f32.mrb[0].mxu0
  %v1738 = vadd.f32 0.0, %v1737
  %v1739 = vpop.f32.mrb[0].mxu0
  %1740 = vmatprep.mubr.bf16.mxu0 %v1525
  %1741 = vmatmul.mubr.bf16.gmra.mrb[0].mxu0 %v1524
  %v1742 = vpop.f32.mrb[0].mxu0
  %v1743 = vadd.f32 0.0, %v1742
  %v1744 = vpop.f32.mrb[0].mxu0
  %v1745 = vpop.f32.mrb[0].mxu0
  %v1746 = vadd.f32 0.0, %v1745
  %v1747 = vpop.f32.mrb[0].mxu0
  %1748 = vmatprep.mubr.bf16.mxu0 %v1527
  %1749 = vmatmul.mubr.bf16.gmra.mrb[0].mxu0 %v1526
  %v1750 = vpop.f32.mrb[0].mxu0
  %v1751 = vadd.f32 0.0, %v1750
  %v1752 = vpop.f32.mrb[0].mxu0
  %v1753 = vpop.f32.mrb[0].mxu0
  %v1754 = vadd.f32 0.0, %v1753
  %v1755 = vpop.f32.mrb[0].mxu0
  %1756 = vmatprep.mubr.bf16.mxu0 %v1529
  %1757 = vmatmul.mubr.bf16.gmra.mrb[0].mxu0 %v1528
  %v1758 = vpop.f32.mrb[0].mxu0
  %v1759 = vadd.f32 0.0, %v1758
  %v1760 = vpop.f32.mrb[0].mxu0
  %v1761 = vpop.f32.mrb[0].mxu0
  %v1762 = vadd.f32 0.0, %v1761
  %v1763 = vpop.f32.mrb[0].mxu0
  %1764 = vmatprep.mubr.bf16.mxu0 %v1531
  %1765 = vmatmul.mubr.bf16.gmra.mrb[0].mxu0 %v1530
  %v1766 = vpop.f32.mrb[0].mxu0
  %v1767 = vadd.f32 0.0, %v1766
  %v1768 = vpop.f32.mrb[0].mxu0
  %v1769 = vpop.f32.mrb[0].mxu0
  %v1770 = vadd.f32 0.0, %v1769
  %v1771 = vpop.f32.mrb[0].mxu0
  %1772 = vmatprep.mubr.bf16.mxu0 %v1533
  %1773 = vmatmul.mubr.bf16.gmra.mrb[0].mxu0 %v1532
  %v1774 = vpop.f32.mrb[0].mxu0
  %v1775 = vadd.f32 0.0, %v1774
  %v1776 = vpop.f32.mrb[0].mxu0
  %v1777 = vpop.f32.mrb[0].mxu0
  %v1778 = vadd.f32 0.0, %v1777
  %v1779 = vpop.f32.mrb[0].mxu0
  %1780 = vmatprep.mubr.bf16.mxu0 %v1535
  %1781 = vmatmul.mubr.bf16.gmra.mrb[0].mxu0 %v1534
  %v1782 = vpop.f32.mrb[0].mxu0
  %v1783 = vadd.f32 0.0, %v1782
  %v1784 = vpop.f32.mrb[0].mxu0
  %v1785 = vpop.f32.mrb[0].mxu0
  %v1786 = vadd.f32 0.0, %v1785
  %v1787 = vpop.f32.mrb[0].mxu0
  %1788 = vmatprep.mubr.bf16.mxu0 %v1537
  %1789 = vmatmul.mubr.bf16.gmra.mrb[0].mxu0 %v1536
  %v1790 = vpop.f32.mrb[0].mxu0
  %v1791 = vadd.f32 0.0, %v1790
  %v1792 = vpop.f32.mrb[0].mxu0
  %v1793 = vpop.f32.mrb[0].mxu0
  %v1794 = vadd.f32 0.0, %v1793
  %v1795 = vpop.f32.mrb[0].mxu0
  %1796 = vmatprep.mubr.bf16.mxu0 %v1539
  %1797 = vmatmul.mubr.bf16.gmra.mrb[0].mxu0 %v1538
  %v1798 = vpop.f32.mrb[0].mxu0
  %v1799 = vadd.f32 0.0, %v1798
  %v1800 = vpop.f32.mrb[0].mxu0
  %v1801 = vpop.f32.mrb[0].mxu0
  %v1802 = vadd.f32 0.0, %v1801
  %v1803 = vpop.f32.mrb[0].mxu0
  %1804 = vmatprep.mubr.bf16.mxu0 %v1541
  %1805 = vmatmul.mubr.bf16.gmra.mrb[0].mxu0 %v1540
  %v1806 = vpop.f32.mrb[0].mxu0
  %v1807 = vadd.f32 0.0, %v1806
  %v1808 = vpop.f32.mrb[0].mxu0
  %v1809 = vpop.f32.mrb[0].mxu0
  %v1810 = vadd.f32 0.0, %v1809
  %v1811 = vpop.f32.mrb[0].mxu0
  %1812 = vmatprep.mubr.bf16.mxu0 %v1543
  %1813 = vmatmul.mubr.bf16.gmra.mrb[0].mxu0 %v1542
  %v1814 = vpop.f32.mrb[0].mxu0
  %v1815 = vadd.f32 0.0, %v1814
  %v1816 = vpop.f32.mrb[0].mxu0
  %v1817 = vpop.f32.mrb[0].mxu0
  %v1818 = vadd.f32 0.0, %v1817
  %v1819 = vpop.f32.mrb[0].mxu0
  %1820 = vmatprep.mubr.bf16.mxu0 %v1545
  %1821 = vmatmul.mubr.bf16.gmra.mrb[0].mxu0 %v1544
  %v1822 = vpop.f32.mrb[0].mxu0
  %v1823 = vadd.f32 0.0, %v1822
  %v1824 = vpop.f32.mrb[0].mxu0
  %v1825 = vpop.f32.mrb[0].mxu0
  %v1826 = vadd.f32 0.0, %v1825
  %v1827 = vpop.f32.mrb[0].mxu0
  %1828 = vmatprep.mubr.bf16.mxu0 %v1547
  %1829 = vmatmul.mubr.bf16.gmra.mrb[0].mxu0 %v1546
  %v1830 = vpop.f32.mrb[0].mxu0
  %v1831 = vadd.f32 0.0, %v1830
  %v1832 = vpop.f32.mrb[0].mxu0
  %v1833 = vpop.f32.mrb[0].mxu0
  %v1834 = vadd.f32 0.0, %v1833
  %v1835 = vpop.f32.mrb[0].mxu0
  %1836 = vdwg.mxu0
  %v1837 = vpack.c.bf16 %v1714, %v1711
  %v1838 = vpack.c.bf16 %v1722, %v1719
  %v1839 = vpack.c.bf16 %v1730, %v1727
  %v1840 = vpack.c.bf16 %v1738, %v1735
  %v1841 = vpack.c.bf16 %v1746, %v1743
  %v1842 = vpack.c.bf16 %v1754, %v1751
  %v1843 = vpack.c.bf16 %v1762, %v1759
  %v1844 = vpack.c.bf16 %v1770, %v1767
  %v1845 = vpack.c.bf16 %v1778, %v1775
  %v1846 = vpack.c.bf16 %v1786, %v1783
  %v1847 = vpack.c.bf16 %v1794, %v1791
  %v1848 = vpack.c.bf16 %v1802, %v1799
  %v1849 = vpack.c.bf16 %v1810, %v1807
  %v1850 = vpack.c.bf16 %v1818, %v1815
  %v1851 = vpack.c.bf16 %v1826, %v1823
  %v1852 = vpack.c.bf16 %v1834, %v1831
  %v1853 = vld [vmem:[%s8] sm:$0x1]
  %v1854 = vpack.c.bf16 %v1853, %v1853
  %v1856 = vpack.i.b16 %v1854, %v1854
  %v1858 = vlaneseq
  %v1859 = vshrl.u32 %v1858, 7
  %v1860 = vsub.s32 0, %v1859
  %v1861 = vrot.slane %v1856, %v1860
  %v1862 = vadd.bf16 %v1837, %v1861
  %v1863 = vadd.bf16 %v1838, %v1861
  %v1864 = vadd.bf16 %v1839, %v1861
  %v1865 = vadd.bf16 %v1840, %v1861
  %v1866 = vadd.bf16 %v1841, %v1861
  %v1867 = vadd.bf16 %v1842, %v1861
  %v1868 = vadd.bf16 %v1843, %v1861
  %v1869 = vadd.bf16 %v1844, %v1861
  %v1870 = vadd.bf16 %v1845, %v1861
  %v1871 = vadd.bf16 %v1846, %v1861
  %v1872 = vadd.bf16 %v1847, %v1861
  %v1873 = vadd.bf16 %v1848, %v1861
  %v1874 = vadd.bf16 %v1849, %v1861
  %v1875 = vadd.bf16 %v1850, %v1861
  %v1876 = vadd.bf16 %v1851, %v1861
  %v1877 = vadd.bf16 %v1852, %v1861
  %v1878 = vadd.bf16 %v863, %v1862
  %v1879 = vadd.bf16 %v864, %v1863
  %v1880 = vadd.bf16 %v865, %v1864
  %v1881 = vadd.bf16 %v866, %v1865
  %v1882 = vadd.bf16 %v867, %v1866
  %v1883 = vadd.bf16 %v868, %v1867
  %v1884 = vadd.bf16 %v869, %v1868
  %v1885 = vadd.bf16 %v870, %v1869
  %v1886 = vadd.bf16 %v871, %v1870
  %v1887 = vadd.bf16 %v872, %v1871
  %v1888 = vadd.bf16 %v873, %v1872
  %v1889 = vadd.bf16 %v874, %v1873
  %v1890 = vadd.bf16 %v875, %v1874
  %v1891 = vadd.bf16 %v876, %v1875
  %v1892 = vadd.bf16 %v877, %v1876
  %v1893 = vadd.bf16 %v878, %v1877
  %v1894 = vld [vmem:[%s9] sm:$0xff]
  %v1895 = vld [vmem:[%s9 + $0x8] sm:$0xff]
  %v1896 = vld [vmem:[%s9 + $0x10] sm:$0xff]
  %v1897 = vld [vmem:[%s9 + $0x18] sm:$0xff]
  %v1898 = vld [vmem:[%s9 + $0x20] sm:$0xff]
  %v1899 = vld [vmem:[%s9 + $0x28] sm:$0xff]
  %v1900 = vld [vmem:[%s9 + $0x30] sm:$0xff]
  %v1901 = vld [vmem:[%s9 + $0x38] sm:$0xff]
  %v1902 = vld [vmem:[%s9 + $0x40] sm:$0xff]
  %v1903 = vld [vmem:[%s9 + $0x48] sm:$0xff]
  %v1904 = vld [vmem:[%s9 + $0x50] sm:$0xff]
  %v1905 = vld [vmem:[%s9 + $0x58] sm:$0xff]
  %v1906 = vld [vmem:[%s9 + $0x60] sm:$0xff]
  %v1907 = vld [vmem:[%s9 + $0x68] sm:$0xff]
  %v1908 = vld [vmem:[%s9 + $0x70] sm:$0xff]
  %v1909 = vld [vmem:[%s9 + $0x78] sm:$0xff]
  %v1926 = vunpack.c.l.b16 %v1894
  %v1927 = vunpack.c.h.b16 %v1894
  %v1928 = vunpack.c.l.b16 %v1895
  %v1929 = vunpack.c.h.b16 %v1895
  %v1930 = vunpack.c.l.b16 %v1896
  %v1931 = vunpack.c.h.b16 %v1896
  %v1932 = vunpack.c.l.b16 %v1897
  %v1933 = vunpack.c.h.b16 %v1897
  %v1934 = vunpack.c.l.b16 %v1898
  %v1935 = vunpack.c.h.b16 %v1898
  %v1936 = vunpack.c.l.b16 %v1899
  %v1937 = vunpack.c.h.b16 %v1899
  %v1938 = vunpack.c.l.b16 %v1900
  %v1939 = vunpack.c.h.b16 %v1900
  %v1940 = vunpack.c.l.b16 %v1901
  %v1941 = vunpack.c.h.b16 %v1901
  %v1942 = vunpack.c.l.b16 %v1902
  %v1943 = vunpack.c.h.b16 %v1902
  %v1944 = vunpack.c.l.b16 %v1903
  %v1945 = vunpack.c.h.b16 %v1903
  %v1946 = vunpack.c.l.b16 %v1904
  %v1947 = vunpack.c.h.b16 %v1904
  %v1948 = vunpack.c.l.b16 %v1905
  %v1949 = vunpack.c.h.b16 %v1905
  %v1950 = vunpack.c.l.b16 %v1906
  %v1951 = vunpack.c.h.b16 %v1906
  %v1952 = vunpack.c.l.b16 %v1907
  %v1953 = vunpack.c.h.b16 %v1907
  %v1954 = vunpack.c.l.b16 %v1908
  %v1955 = vunpack.c.h.b16 %v1908
  %v1956 = vunpack.c.l.b16 %v1909
  %v1957 = vunpack.c.h.b16 %v1909
  %v1958 = vpack.c.b16 %v1928, %v1926
  %v1959 = vpack.c.b16 %v1929, %v1927
  %v1960 = vpack.c.b16 %v1932, %v1930
  %v1961 = vpack.c.b16 %v1933, %v1931
  %v1962 = vpack.c.b16 %v1936, %v1934
  %v1963 = vpack.c.b16 %v1937, %v1935
  %v1964 = vpack.c.b16 %v1940, %v1938
  %v1965 = vpack.c.b16 %v1941, %v1939
  %v1966 = vpack.c.b16 %v1944, %v1942
  %v1967 = vpack.c.b16 %v1945, %v1943
  %v1968 = vpack.c.b16 %v1948, %v1946
  %v1969 = vpack.c.b16 %v1949, %v1947
  %v1970 = vpack.c.b16 %v1952, %v1950
  %v1971 = vpack.c.b16 %v1953, %v1951
  %v1972 = vpack.c.b16 %v1956, %v1954
  %v1973 = vpack.c.b16 %v1957, %v1955
  %1990 = vmatprep.subr.bf16.mxu0 %v1959
  %1991 = vmatpush1.bf16.msra.mxu0 %v1958
  %1992 = vmatprep.subr.bf16.mxu0 %v1961
  %1993 = vmatpush1.bf16.msra.mxu0 %v1960
  %1994 = vmatprep.subr.bf16.mxu0 %v1963
  %1995 = vmatpush1.bf16.msra.mxu0 %v1962
  %1996 = vmatprep.subr.bf16.mxu0 %v1965
  %1997 = vmatpush1.bf16.msra.mxu0 %v1964
  %1998 = vmatprep.subr.bf16.mxu0 %v1967
  %1999 = vmatpush1.bf16.msra.mxu0 %v1966
  %2000 = vmatprep.subr.bf16.mxu0 %v1969
  %2001 = vmatpush1.bf16.msra.mxu0 %v1968
  %2002 = vmatprep.subr.bf16.mxu0 %v1971
  %2003 = vmatpush1.bf16.msra.mxu0 %v1970
  %2004 = vmatprep.subr.bf16.mxu0 %v1973
  %2005 = vmatpush1.bf16.msra.mxu0 %v1972
  %2006 = vmatprep.subr.bf16.mxu0 0
  %2007 = vmatpush1.bf16.msra.mxu0 0
  %2008 = vmatprep.subr.bf16.mxu0 0
  %2009 = vmatpush1.bf16.msra.mxu0 0
  %2010 = vmatprep.subr.bf16.mxu0 0
  %2011 = vmatpush1.bf16.msra.mxu0 0
  %2012 = vmatprep.subr.bf16.mxu0 0
  %2013 = vmatpush1.bf16.msra.mxu0 0
  %2014 = vmatprep.subr.bf16.mxu0 0
  %2015 = vmatpush1.bf16.msra.mxu0 0
  %2016 = vmatprep.subr.bf16.mxu0 0
  %2017 = vmatpush1.bf16.msra.mxu0 0
  %2018 = vmatprep.subr.bf16.mxu0 0
  %2019 = vmatpush1.bf16.msra.mxu0 0
  %2020 = vmatprep.subr.bf16.mxu0 0
  %2021 = vmatpush1.bf16.msra.mxu0 0
  %2022 = vmatprep.mubr.bf16.mxu0 0
  %2023 = vmatmul.mubr.bf16.gmra.mrb[0].mxu0 %v1878
  %v2024 = vpop.f32.mrb[0].mxu0
  %v2025 = vadd.f32 0.0, %v2024
  %v2026 = vpop.f32.mrb[0].mxu0
  %v2027 = vadd.f32 0.0, %v2026
  %v2028 = vpop.f32.mrb[0].mxu0
  %v2029 = vadd.f32 0.0, %v2028
  %v2030 = vpop.f32.mrb[0].mxu0
  %v2031 = vadd.f32 0.0, %v2030
  %2032 = vmatprep.mubr.bf16.mxu0 0
  %2033 = vmatmul.mubr.bf16.gmra.mrb[0].mxu0 %v1879
  %v2034 = vpop.f32.mrb[0].mxu0
  %v2035 = vadd.f32 0.0, %v2034
  %v2036 = vpop.f32.mrb[0].mxu0
  %v2037 = vadd.f32 0.0, %v2036
  %v2038 = vpop.f32.mrb[0].mxu0
  %v2039 = vadd.f32 0.0, %v2038
  %v2040 = vpop.f32.mrb[0].mxu0
  %v2041 = vadd.f32 0.0, %v2040
  %2042 = vmatprep.mubr.bf16.mxu0 0
  %2043 = vmatmul.mubr.bf16.gmra.mrb[0].mxu0 %v1880
  %v2044 = vpop.f32.mrb[0].mxu0
  %v2045 = vadd.f32 0.0, %v2044
  %v2046 = vpop.f32.mrb[0].mxu0
  %v2047 = vadd.f32 0.0, %v2046
  %v2048 = vpop.f32.mrb[0].mxu0
  %v2049 = vadd.f32 0.0, %v2048
  %v2050 = vpop.f32.mrb[0].mxu0
  %v2051 = vadd.f32 0.0, %v2050
  %2052 = vmatprep.mubr.bf16.mxu0 0
  %2053 = vmatmul.mubr.bf16.gmra.mrb[0].mxu0 %v1881
  %v2054 = vpop.f32.mrb[0].mxu0
  %v2055 = vadd.f32 0.0, %v2054
  %v2056 = vpop.f32.mrb[0].mxu0
  %v2057 = vadd.f32 0.0, %v2056
  %v2058 = vpop.f32.mrb[0].mxu0
  %v2059 = vadd.f32 0.0, %v2058
  %v2060 = vpop.f32.mrb[0].mxu0
  %v2061 = vadd.f32 0.0, %v2060
  %2062 = vmatprep.mubr.bf16.mxu0 0
  %2063 = vmatmul.mubr.bf16.gmra.mrb[0].mxu0 %v1882
  %v2064 = vpop.f32.mrb[0].mxu0
  %v2065 = vadd.f32 0.0, %v2064
  %v2066 = vpop.f32.mrb[0].mxu0
  %v2067 = vadd.f32 0.0, %v2066
  %v2068 = vpop.f32.mrb[0].mxu0
  %v2069 = vadd.f32 0.0, %v2068
  %v2070 = vpop.f32.mrb[0].mxu0
  %v2071 = vadd.f32 0.0, %v2070
  %2072 = vmatprep.mubr.bf16.mxu0 0
  %2073 = vmatmul.mubr.bf16.gmra.mrb[0].mxu0 %v1883
  %v2074 = vpop.f32.mrb[0].mxu0
  %v2075 = vadd.f32 0.0, %v2074
  %v2076 = vpop.f32.mrb[0].mxu0
  %v2077 = vadd.f32 0.0, %v2076
  %v2078 = vpop.f32.mrb[0].mxu0
  %v2079 = vadd.f32 0.0, %v2078
  %v2080 = vpop.f32.mrb[0].mxu0
  %v2081 = vadd.f32 0.0, %v2080
  %2082 = vmatprep.mubr.bf16.mxu0 0
  %2083 = vmatmul.mubr.bf16.gmra.mrb[0].mxu0 %v1884
  %v2084 = vpop.f32.mrb[0].mxu0
  %v2085 = vadd.f32 0.0, %v2084
  %v2086 = vpop.f32.mrb[0].mxu0
  %v2087 = vadd.f32 0.0, %v2086
  %v2088 = vpop.f32.mrb[0].mxu0
  %v2089 = vadd.f32 0.0, %v2088
  %v2090 = vpop.f32.mrb[0].mxu0
  %v2091 = vadd.f32 0.0, %v2090
  %2092 = vmatprep.mubr.bf16.mxu0 0
  %2093 = vmatmul.mubr.bf16.gmra.mrb[0].mxu0 %v1885
  %v2094 = vpop.f32.mrb[0].mxu0
  %v2095 = vadd.f32 0.0, %v2094
  %v2096 = vpop.f32.mrb[0].mxu0
  %v2097 = vadd.f32 0.0, %v2096
  %v2098 = vpop.f32.mrb[0].mxu0
  %v2099 = vadd.f32 0.0, %v2098
  %v2100 = vpop.f32.mrb[0].mxu0
  %v2101 = vadd.f32 0.0, %v2100
  %2102 = vmatprep.mubr.bf16.mxu0 0
  %2103 = vmatmul.mubr.bf16.gmra.mrb[0].mxu0 %v1886
  %v2104 = vpop.f32.mrb[0].mxu0
  %v2105 = vadd.f32 0.0, %v2104
  %v2106 = vpop.f32.mrb[0].mxu0
  %v2107 = vadd.f32 0.0, %v2106
  %v2108 = vpop.f32.mrb[0].mxu0
  %v2109 = vadd.f32 0.0, %v2108
  %v2110 = vpop.f32.mrb[0].mxu0
  %v2111 = vadd.f32 0.0, %v2110
  %2112 = vmatprep.mubr.bf16.mxu0 0
  %2113 = vmatmul.mubr.bf16.gmra.mrb[0].mxu0 %v1887
  %v2114 = vpop.f32.mrb[0].mxu0
  %v2115 = vadd.f32 0.0, %v2114
  %v2116 = vpop.f32.mrb[0].mxu0
  %v2117 = vadd.f32 0.0, %v2116
  %v2118 = vpop.f32.mrb[0].mxu0
  %v2119 = vadd.f32 0.0, %v2118
  %v2120 = vpop.f32.mrb[0].mxu0
  %v2121 = vadd.f32 0.0, %v2120
  %2122 = vmatprep.mubr.bf16.mxu0 0
  %2123 = vmatmul.mubr.bf16.gmra.mrb[0].mxu0 %v1888
  %v2124 = vpop.f32.mrb[0].mxu0
  %v2125 = vadd.f32 0.0, %v2124
  %v2126 = vpop.f32.mrb[0].mxu0
  %v2127 = vadd.f32 0.0, %v2126
  %v2128 = vpop.f32.mrb[0].mxu0
  %v2129 = vadd.f32 0.0, %v2128
  %v2130 = vpop.f32.mrb[0].mxu0
  %v2131 = vadd.f32 0.0, %v2130
  %2132 = vmatprep.mubr.bf16.mxu0 0
  %2133 = vmatmul.mubr.bf16.gmra.mrb[0].mxu0 %v1889
  %v2134 = vpop.f32.mrb[0].mxu0
  %v2135 = vadd.f32 0.0, %v2134
  %v2136 = vpop.f32.mrb[0].mxu0
  %v2137 = vadd.f32 0.0, %v2136
  %v2138 = vpop.f32.mrb[0].mxu0
  %v2139 = vadd.f32 0.0, %v2138
  %v2140 = vpop.f32.mrb[0].mxu0
  %v2141 = vadd.f32 0.0, %v2140
  %2142 = vmatprep.mubr.bf16.mxu0 0
  %2143 = vmatmul.mubr.bf16.gmra.mrb[0].mxu0 %v1890
  %v2144 = vpop.f32.mrb[0].mxu0
  %v2145 = vadd.f32 0.0, %v2144
  %v2146 = vpop.f32.mrb[0].mxu0
  %v2147 = vadd.f32 0.0, %v2146
  %v2148 = vpop.f32.mrb[0].mxu0
  %v2149 = vadd.f32 0.0, %v2148
  %v2150 = vpop.f32.mrb[0].mxu0
  %v2151 = vadd.f32 0.0, %v2150
  %2152 = vmatprep.mubr.bf16.mxu0 0
  %2153 = vmatmul.mubr.bf16.gmra.mrb[0].mxu0 %v1891
  %v2154 = vpop.f32.mrb[0].mxu0
  %v2155 = vadd.f32 0.0, %v2154
  %v2156 = vpop.f32.mrb[0].mxu0
  %v2157 = vadd.f32 0.0, %v2156
  %v2158 = vpop.f32.mrb[0].mxu0
  %v2159 = vadd.f32 0.0, %v2158
  %v2160 = vpop.f32.mrb[0].mxu0
  %v2161 = vadd.f32 0.0, %v2160
  %2162 = vmatprep.mubr.bf16.mxu0 0
  %2163 = vmatmul.mubr.bf16.gmra.mrb[0].mxu0 %v1892
  %v2164 = vpop.f32.mrb[0].mxu0
  %v2165 = vadd.f32 0.0, %v2164
  %v2166 = vpop.f32.mrb[0].mxu0
  %v2167 = vadd.f32 0.0, %v2166
  %v2168 = vpop.f32.mrb[0].mxu0
  %v2169 = vadd.f32 0.0, %v2168
  %v2170 = vpop.f32.mrb[0].mxu0
  %v2171 = vadd.f32 0.0, %v2170
  %2172 = vmatprep.mubr.bf16.mxu0 0
  %2173 = vmatmul.mubr.bf16.gmra.mrb[0].mxu0 %v1893
  %v2174 = vpop.f32.mrb[0].mxu0
  %v2175 = vadd.f32 0.0, %v2174
  %v2176 = vpop.f32.mrb[0].mxu0
  %v2177 = vadd.f32 0.0, %v2176
  %v2178 = vpop.f32.mrb[0].mxu0
  %v2179 = vadd.f32 0.0, %v2178
  %v2180 = vpop.f32.mrb[0].mxu0
  %v2181 = vadd.f32 0.0, %v2180
  %2182 = vdwg.mxu0
  %v2183 = vpack.c.bf16 %v2029, %v2025
  %v2184 = vpack.c.bf16 %v2031, %v2027
  %v2185 = vpack.c.bf16 %v2039, %v2035
  %v2186 = vpack.c.bf16 %v2041, %v2037
  %v2187 = vpack.c.bf16 %v2049, %v2045
  %v2188 = vpack.c.bf16 %v2051, %v2047
  %v2189 = vpack.c.bf16 %v2059, %v2055
  %v2190 = vpack.c.bf16 %v2061, %v2057
  %v2191 = vpack.c.bf16 %v2069, %v2065
  %v2192 = vpack.c.bf16 %v2071, %v2067
  %v2193 = vpack.c.bf16 %v2079, %v2075
  %v2194 = vpack.c.bf16 %v2081, %v2077
  %v2195 = vpack.c.bf16 %v2089, %v2085
  %v2196 = vpack.c.bf16 %v2091, %v2087
  %v2197 = vpack.c.bf16 %v2099, %v2095
  %v2198 = vpack.c.bf16 %v2101, %v2097
  %v2199 = vpack.c.bf16 %v2109, %v2105
  %v2200 = vpack.c.bf16 %v2111, %v2107
  %v2201 = vpack.c.bf16 %v2119, %v2115
  %v2202 = vpack.c.bf16 %v2121, %v2117
  %v2203 = vpack.c.bf16 %v2129, %v2125
  %v2204 = vpack.c.bf16 %v2131, %v2127
  %v2205 = vpack.c.bf16 %v2139, %v2135
  %v2206 = vpack.c.bf16 %v2141, %v2137
  %v2207 = vpack.c.bf16 %v2149, %v2145
  %v2208 = vpack.c.bf16 %v2151, %v2147
  %v2209 = vpack.c.bf16 %v2159, %v2155
  %v2210 = vpack.c.bf16 %v2161, %v2157
  %v2211 = vpack.c.bf16 %v2169, %v2165
  %v2212 = vpack.c.bf16 %v2171, %v2167
  %v2213 = vpack.c.bf16 %v2179, %v2175
  %v2214 = vpack.c.bf16 %v2181, %v2177
  %v2215 = vld [vmem:[%s10] sm:$0x3]
  %v2217 = vlaneseq
  %v2218 = vshrl.u32 %v2217, 7
  %v2219 = vsub.s32 0, %v2218
  %v2220 = vrot.slane %v2215, %v2219
  %v2221 = vlaneseq
  %v2222 = vshrl.u32 %v2221, 7
  %v2223 = vsub.s32 1, %v2222
  %v2224 = vrot.slane %v2215, %v2223
  %v2227 = vpack.c.bf16 %v2220, %v2220
  %v2228 = vpack.c.bf16 %v2224, %v2224
  %v2230 = vpack.i.b16 %v2227, %v2227
  %v2232 = vlaneseq
  %v2233 = vshrl.u32 %v2232, 7
  %v2234 = vsub.s32 0, %v2233
  %v2235 = vrot.slane %v2230, %v2234
  %v2237 = vpack.i.b16 %v2228, %v2228
  %v2239 = vlaneseq
  %v2240 = vshrl.u32 %v2239, 7
  %v2241 = vsub.s32 0, %v2240
  %v2242 = vrot.slane %v2237, %v2241
  %v2243 = vadd.bf16 %v2183, %v2235
  %v2244 = vadd.bf16 %v2184, %v2242
  %v2245 = vadd.bf16 %v2185, %v2235
  %v2246 = vadd.bf16 %v2186, %v2242
  %v2247 = vadd.bf16 %v2187, %v2235
  %v2248 = vadd.bf16 %v2188, %v2242
  %v2249 = vadd.bf16 %v2189, %v2235
  %v2250 = vadd.bf16 %v2190, %v2242
  %v2251 = vadd.bf16 %v2191, %v2235
  %v2252 = vadd.bf16 %v2192, %v2242
  %v2253 = vadd.bf16 %v2193, %v2235
  %v2254 = vadd.bf16 %v2194, %v2242
  %v2255 = vadd.bf16 %v2195, %v2235
  %v2256 = vadd.bf16 %v2196, %v2242
  %v2257 = vadd.bf16 %v2197, %v2235
  %v2258 = vadd.bf16 %v2198, %v2242
  %v2259 = vadd.bf16 %v2199, %v2235
  %v2260 = vadd.bf16 %v2200, %v2242
  %v2261 = vadd.bf16 %v2201, %v2235
  %v2262 = vadd.bf16 %v2202, %v2242
  %v2263 = vadd.bf16 %v2203, %v2235
  %v2264 = vadd.bf16 %v2204, %v2242
  %v2265 = vadd.bf16 %v2205, %v2235
  %v2266 = vadd.bf16 %v2206, %v2242
  %v2267 = vadd.bf16 %v2207, %v2235
  %v2268 = vadd.bf16 %v2208, %v2242
  %v2269 = vadd.bf16 %v2209, %v2235
  %v2270 = vadd.bf16 %v2210, %v2242
  %v2271 = vadd.bf16 %v2211, %v2235
  %v2272 = vadd.bf16 %v2212, %v2242
  %v2273 = vadd.bf16 %v2213, %v2235
  %v2274 = vadd.bf16 %v2214, %v2242
  %v2307 = vunpack.c.l.b16 %v2243
  %v2308 = vunpack.c.l.b16 %v2244
  %v2309 = vunpack.c.h.b16 %v2243
  %v2310 = vunpack.c.h.b16 %v2244
  %v2311 = vunpack.c.l.b16 %v2245
  %v2312 = vunpack.c.l.b16 %v2246
  %v2313 = vunpack.c.h.b16 %v2245
  %v2314 = vunpack.c.h.b16 %v2246
  %v2315 = vunpack.c.l.b16 %v2247
  %v2316 = vunpack.c.l.b16 %v2248
  %v2317 = vunpack.c.h.b16 %v2247
  %v2318 = vunpack.c.h.b16 %v2248
  %v2319 = vunpack.c.l.b16 %v2249
  %v2320 = vunpack.c.l.b16 %v2250
  %v2321 = vunpack.c.h.b16 %v2249
  %v2322 = vunpack.c.h.b16 %v2250
  %v2323 = vunpack.c.l.b16 %v2251
  %v2324 = vunpack.c.l.b16 %v2252
  %v2325 = vunpack.c.h.b16 %v2251
  %v2326 = vunpack.c.h.b16 %v2252
  %v2327 = vunpack.c.l.b16 %v2253
  %v2328 = vunpack.c.l.b16 %v2254
  %v2329 = vunpack.c.h.b16 %v2253
  %v2330 = vunpack.c.h.b16 %v2254
  %v2331 = vunpack.c.l.b16 %v2255
  %v2332 = vunpack.c.l.b16 %v2256
  %v2333 = vunpack.c.h.b16 %v2255
  %v2334 = vunpack.c.h.b16 %v2256
  %v2335 = vunpack.c.l.b16 %v2257
  %v2336 = vunpack.c.l.b16 %v2258
  %v2337 = vunpack.c.h.b16 %v2257
  %v2338 = vunpack.c.h.b16 %v2258
  %v2339 = vunpack.c.l.b16 %v2259
  %v2340 = vunpack.c.l.b16 %v2260
  %v2341 = vunpack.c.h.b16 %v2259
  %v2342 = vunpack.c.h.b16 %v2260
  %v2343 = vunpack.c.l.b16 %v2261
  %v2344 = vunpack.c.l.b16 %v2262
  %v2345 = vunpack.c.h.b16 %v2261
  %v2346 = vunpack.c.h.b16 %v2262
  %v2347 = vunpack.c.l.b16 %v2263
  %v2348 = vunpack.c.l.b16 %v2264
  %v2349 = vunpack.c.h.b16 %v2263
  %v2350 = vunpack.c.h.b16 %v2264
  %v2351 = vunpack.c.l.b16 %v2265
  %v2352 = vunpack.c.l.b16 %v2266
  %v2353 = vunpack.c.h.b16 %v2265
  %v2354 = vunpack.c.h.b16 %v2266
  %v2355 = vunpack.c.l.b16 %v2267
  %v2356 = vunpack.c.l.b16 %v2268
  %v2357 = vunpack.c.h.b16 %v2267
  %v2358 = vunpack.c.h.b16 %v2268
  %v2359 = vunpack.c.l.b16 %v2269
  %v2360 = vunpack.c.l.b16 %v2270
  %v2361 = vunpack.c.h.b16 %v2269
  %v2362 = vunpack.c.h.b16 %v2270
  %v2363 = vunpack.c.l.b16 %v2271
  %v2364 = vunpack.c.l.b16 %v2272
  %v2365 = vunpack.c.h.b16 %v2271
  %v2366 = vunpack.c.h.b16 %v2272
  %v2367 = vunpack.c.l.b16 %v2273
  %v2368 = vunpack.c.l.b16 %v2274
  %v2369 = vunpack.c.h.b16 %v2273
  %v2370 = vunpack.c.h.b16 %v2274
  %v2371 = vpack.c.b16 %v2308, %v2307
  %v2372 = vpack.c.b16 %v2310, %v2309
  %v2373 = vpack.c.b16 %v2312, %v2311
  %v2374 = vpack.c.b16 %v2314, %v2313
  %v2375 = vpack.c.b16 %v2316, %v2315
  %v2376 = vpack.c.b16 %v2318, %v2317
  %v2377 = vpack.c.b16 %v2320, %v2319
  %v2378 = vpack.c.b16 %v2322, %v2321
  %v2379 = vpack.c.b16 %v2324, %v2323
  %v2380 = vpack.c.b16 %v2326, %v2325
  %v2381 = vpack.c.b16 %v2328, %v2327
  %v2382 = vpack.c.b16 %v2330, %v2329
  %v2383 = vpack.c.b16 %v2332, %v2331
  %v2384 = vpack.c.b16 %v2334, %v2333
  %v2385 = vpack.c.b16 %v2336, %v2335
  %v2386 = vpack.c.b16 %v2338, %v2337
  %v2387 = vpack.c.b16 %v2340, %v2339
  %v2388 = vpack.c.b16 %v2342, %v2341
  %v2389 = vpack.c.b16 %v2344, %v2343
  %v2390 = vpack.c.b16 %v2346, %v2345
  %v2391 = vpack.c.b16 %v2348, %v2347
  %v2392 = vpack.c.b16 %v2350, %v2349
  %v2393 = vpack.c.b16 %v2352, %v2351
  %v2394 = vpack.c.b16 %v2354, %v2353
  %v2395 = vpack.c.b16 %v2356, %v2355
  %v2396 = vpack.c.b16 %v2358, %v2357
  %v2397 = vpack.c.b16 %v2360, %v2359
  %v2398 = vpack.c.b16 %v2362, %v2361
  %v2399 = vpack.c.b16 %v2364, %v2363
  %v2400 = vpack.c.b16 %v2366, %v2365
  %v2401 = vpack.c.b16 %v2368, %v2367
  %v2402 = vpack.c.b16 %v2370, %v2369
  %2435 = vst [vmem:[%s11] sm:$0xff] %v2371
  %2436 = vst [vmem:[%s11 + $0x8] sm:$0xff] %v2372
  %2437 = vst [vmem:[%s11 + $0x10] sm:$0xff] %v2373
  %2438 = vst [vmem:[%s11 + $0x18] sm:$0xff] %v2374
  %2439 = vst [vmem:[%s11 + $0x20] sm:$0xff] %v2375
  %2440 = vst [vmem:[%s11 + $0x28] sm:$0xff] %v2376
  %2441 = vst [vmem:[%s11 + $0x30] sm:$0xff] %v2377
  %2442 = vst [vmem:[%s11 + $0x38] sm:$0xff] %v2378
  %2443 = vst [vmem:[%s11 + $0x40] sm:$0xff] %v2379
  %2444 = vst [vmem:[%s11 + $0x48] sm:$0xff] %v2380
  %2445 = vst [vmem:[%s11 + $0x50] sm:$0xff] %v2381
  %2446 = vst [vmem:[%s11 + $0x58] sm:$0xff] %v2382
  %2447 = vst [vmem:[%s11 + $0x60] sm:$0xff] %v2383
  %2448 = vst [vmem:[%s11 + $0x68] sm:$0xff] %v2384
  %2449 = vst [vmem:[%s11 + $0x70] sm:$0xff] %v2385
  %2450 = vst [vmem:[%s11 + $0x78] sm:$0xff] %v2386
  %2451 = vst [vmem:[%s11 + $0x80] sm:$0xff] %v2387
  %2452 = vst [vmem:[%s11 + $0x88] sm:$0xff] %v2388
  %2453 = vst [vmem:[%s11 + $0x90] sm:$0xff] %v2389
  %2454 = vst [vmem:[%s11 + $0x98] sm:$0xff] %v2390
  %2455 = vst [vmem:[%s11 + $0xa0] sm:$0xff] %v2391
  %2456 = vst [vmem:[%s11 + $0xa8] sm:$0xff] %v2392
  %2457 = vst [vmem:[%s11 + $0xb0] sm:$0xff] %v2393
  %2458 = vst [vmem:[%s11 + $0xb8] sm:$0xff] %v2394
  %2459 = vst [vmem:[%s11 + $0xc0] sm:$0xff] %v2395
  %2460 = vst [vmem:[%s11 + $0xc8] sm:$0xff] %v2396
  %2461 = vst [vmem:[%s11 + $0xd0] sm:$0xff] %v2397
  %2462 = vst [vmem:[%s11 + $0xd8] sm:$0xff] %v2398
  %2463 = vst [vmem:[%s11 + $0xe0] sm:$0xff] %v2399
  %2464 = vst [vmem:[%s11 + $0xe8] sm:$0xff] %v2400
  %2465 = vst [vmem:[%s11 + $0xf0] sm:$0xff] %v2401
  %2466 = vst [vmem:[%s11 + $0xf8] sm:$0xff] %v2402
  // Predicated region
  $region46: #{full_mask2former_extractor.1} parent=0 // pred_check
    _
  $region47: #{full_mask2former_extractor.1} parent=0 // pred_check_branch
    %2468 = sbr.rel (0) target = $region49
  $region48: #{full_mask2former_extractor.1} parent=0 // pred_region
    _
  $region49: #{full_mask2former_extractor.1} parent=0 // pred_fallthru
    _
  // Predicated region
  $region50: #{full_mask2former_extractor.1} parent=0 // pred_check
    _
  $region51: #{full_mask2former_extractor.1} parent=0 // pred_check_branch
    %2470 = sbr.rel (0) target = $region53
  $region52: #{full_mask2former_extractor.1} parent=0 // pred_region
    _
  $region53: #{full_mask2former_extractor.1} parent=0 // pred_fallthru
    _

</llo_original>
